<compile_context>
chip_gen: v7x
topology: tpu7x:2x2x1
jax: 0.10.0
libtpu: 0.0.40
codegen_flags: <defaults>
</compile_context>

<pallas_src>
import functools

import jax
import jax.numpy as jnp
from jax.experimental import pallas as pl
from jax.experimental.pallas import tpu as pltpu

LANE = 128
SUBLANE = 8
NEG_INF = -1e30  # f32-safe sentinel for padded class lanes (output path stays f32)


# ----------------------------------------------------------------------------
# Helpers
# ----------------------------------------------------------------------------
def _round_up(v, m):
    return ((v + m - 1) // m) * m


def _pad2d(a, rows, cols):
    out = jnp.zeros((rows, cols), a.dtype)
    return out.at[: a.shape[0], : a.shape[1]].set(a)


def _full_spec(a):
    zeros = (0,) * a.ndim
    return pl.BlockSpec(a.shape, lambda i, _z=zeros: _z)


# ----------------------------------------------------------------------------
# Fused Pallas kernel
# ----------------------------------------------------------------------------
def _fused_gnn_kernel(num_layers, num_real_nodes,
                      adj_ref, x_ref, convw_ref, bias_ref, pool_ref,
                      lw1_ref, lw2_ref, o_ref, concat_ref):
    adj = adj_ref[...]                      # bf16 (Np, Np), VMEM-resident for all layers
    h = x_ref[...]                          # bf16 (Np, 128)
    n_pad = adj.shape[0]

    # Mask that zeroes activations of padded node rows (rows >= num_real_nodes), so correctness
    # no longer depends on pool/adj having zero entries for padded nodes.
    row_mask = jax.lax.broadcasted_iota(jnp.int32, (n_pad, LANE), 0) < num_real_nodes

    # Statically unrolled GCN stack: tanh(A_hat @ (H @ W) + b); each layer's activation lands
    # once, as bf16, in a 128-wide lane-dense column slice of the concat scratch.
    for l in range(num_layers):
        w = convw_ref[l]                                 # bf16 (128, 128), zero-padded
        b = bias_ref[pl.ds(l, 1), :]                     # f32  (1, 128),  zero-padded
        xw = jnp.dot(h, w, preferred_element_type=jnp.float32)
        ax = jnp.dot(adj, xw.astype(jnp.bfloat16), preferred_element_type=jnp.float32)
        act = jnp.where(row_mask, jnp.tanh(ax + b), 0.0)  # f32 elementwise (EUP/VPU)
        h = act.astype(jnp.bfloat16)                      # single bf16 copy (scratch + next layer)
        concat_ref[:, l * LANE:(l + 1) * LANE] = h

    # global_add_pool: pool is a (G_pad, N_pad) 0/1 segment matrix; bf16 x bf16 -> f32 acc.
    pooled = jnp.dot(pool_ref[...], concat_ref[...], preferred_element_type=jnp.float32)

    # lin1 + ReLU
    lb1 = bias_ref[pl.ds(num_layers, 1), :]
    h1 = jnp.dot(pooled.astype(jnp.bfloat16), lw1_ref[...],
                 preferred_element_type=jnp.float32) + lb1
    h1 = jnp.maximum(h1, 0.0)

    # TODO(synk): F.dropout(p=0.5) / dropout_adj skipped -- module evaluated in inference mode.

    # lin2 (padded class columns carry bias = -1e30 so they vanish in the softmax)
    lb2 = bias_ref[pl.ds(num_layers + 1, 1), :]
    logits = jnp.dot(h1.astype(jnp.bfloat16), lw2_ref[...],
                     preferred_element_type=jnp.float32) + lb2

    # max-stabilized log_softmax in f32
    m = jnp.max(logits, axis=-1, keepdims=True)
    z = logits - m
    lse = jnp.log(jnp.sum(jnp.exp(z), axis=-1, keepdims=True))
    o_ref[...] = z - lse


# ----------------------------------------------------------------------------
# Wrapper: pad to lane-dense shapes, single pallas_call, slice real outputs
# ----------------------------------------------------------------------------
def gnn_forward(params, x, adj_hat, pool, num_classes):
    latent_dim = [w.shape[1] for (w, _) in params["convs"]]
    num_layers = len(latent_dim)
    n, f = x.shape
    g = pool.shape[0]
    hid = params["lin1_w"].shape[1]

    # This fully-resident path assumes every feature dim fits one 128-lane panel.
    assert f <= LANE and hid <= LANE and num_classes <= LANE
    assert all(d <= LANE for d in latent_dim)

    n_pad = _round_up(max(n, LANE), LANE)          # N is a lane dim of adj -> pad to 128
    g_pad = _round_up(max(g, SUBLANE), SUBLANE)
    hid_pad = LANE
    cls_pad = LANE

    # bf16 MXU operands (f32 accumulation inside the kernel)
    adj_p = _pad2d(adj_hat, n_pad, n_pad).astype(jnp.bfloat16)
    x_p = _pad2d(x, n_pad, LANE).astype(jnp.bfloat16)
    pool_p = _pad2d(pool, g_pad, n_pad).astype(jnp.bfloat16)   # 0/1 values -> lossless bf16

    # Packed conv weights: (L, 128, 128) bf16, zero-padded rows/cols.
    convw_p = jnp.zeros((num_layers, LANE, LANE), jnp.float32)
    for l, (w, _) in enumerate(params["convs"]):
        convw_p = convw_p.at[l, : w.shape[0], : w.shape[1]].set(w)
    convw_p = convw_p.astype(jnp.bfloat16)

    # Packed biases: rows 0..L-1 conv biases, row L = lin1 bias, row L+1 = lin2 bias with the
    # -1e30 sentinel in padded class lanes; padded up to 8 sublanes. f32 throughout.
    bias_p = jnp.zeros((SUBLANE, LANE), jnp.float32)
    for l, (_, b) in enumerate(params["convs"]):
        bias_p = bias_p.at[l, : b.shape[0]].set(b)
    bias_p = bias_p.at[num_layers, :hid].set(params["lin1_b"])
    bias_p = bias_p.at[num_layers + 1, :].set(NEG_INF)
    bias_p = bias_p.at[num_layers + 1, :num_classes].set(params["lin2_b"])

    # lin1 weight rearranged so row block l*128 .. l*128+latent_dim[l] matches layer l's slot
    # in the 4x128 padded concat scratch (padded rows are zero).
    lw1 = params["lin1_w"]
    lw1_p = jnp.zeros((num_layers * LANE, hid_pad), jnp.float32)
    off = 0
    for l, d in enumerate(latent_dim):
        lw1_p = lw1_p.at[l * LANE: l * LANE + d, :hid].set(lw1[off: off + d, :])
        off += d
    lw1_p = lw1_p.astype(jnp.bfloat16)

    lw2_p = _pad2d(params["lin2_w"], hid_pad, cls_pad).astype(jnp.bfloat16)

    operands = [adj_p, x_p, convw_p, bias_p, pool_p, lw1_p, lw2_p]

    concat_bytes = n_pad * num_layers * LANE * 2          # bf16 scratch
    out_bytes = g_pad * cls_pad * 4
    resident_bytes = sum(int(a.size) * a.dtype.itemsize for a in operands)
    vmem_limit = int(2 * (resident_bytes + out_bytes) + concat_bytes) + (1 << 20)
    vmem_limit = min(max(vmem_limit, 4 << 20), 100 << 20)

    flops = 0
    for _ in range(num_layers):
        flops += 2 * n_pad * LANE * LANE            # H @ W
        flops += 2 * n_pad * n_pad * LANE           # A_hat @ (HW)
    flops += 2 * g_pad * n_pad * (num_layers * LANE)      # pooling
    flops += 2 * g_pad * (num_layers * LANE) * hid_pad    # lin1
    flops += 2 * g_pad * hid_pad * cls_pad                # lin2
    transcendentals = num_layers * n_pad * LANE + g_pad * cls_pad + g_pad
    bytes_accessed = resident_bytes + out_bytes

    kernel = functools.partial(_fused_gnn_kernel, num_layers, n)
    out_pad = pl.pallas_call(
        kernel,
        out_shape=jax.ShapeDtypeStruct((g_pad, cls_pad), jnp.float32),
        grid=(1,),
        in_specs=[_full_spec(a) for a in operands],
        out_specs=pl.BlockSpec((g_pad, cls_pad), lambda i: (0, 0)),
        scratch_shapes=[pltpu.VMEM((n_pad, num_layers * LANE), jnp.bfloat16)],
        compiler_params=pltpu.CompilerParams(
            dimension_semantics=("arbitrary",),
            vmem_limit_bytes=vmem_limit,
        ),
        cost_estimate=pl.CostEstimate(
            flops=flops,
            transcendentals=transcendentals,
            bytes_accessed=bytes_accessed,
        ),
    )(*operands)

    return out_pad[:g, :num_classes]


# ----------------------------------------------------------------------------
# Pure-JAX f32 reference (for validation)
# ----------------------------------------------------------------------------
def gnn_reference(params, x, adj_hat, pool):
    concat = []
    h = x
    for (w, b) in params["convs"]:
        h = jnp.tanh(adj_hat @ (h @ w) + b)
        concat.append(h)
    concat = jnp.concatenate(concat, axis=1)
    pooled = pool @ concat
    h1 = jax.nn.relu(pooled @ params["lin1_w"] + params["lin1_b"])
    logits = h1 @ params["lin2_w"] + params["lin2_b"]
    return jax.nn.log_softmax(logits, axis=-1)


# ----------------------------------------------------------------------------
# Graph / parameter construction
# ----------------------------------------------------------------------------
def build_normalized_adj(edge_index, num_nodes):
    # dense A_hat = D^-1/2 (A + I) D^-1/2  (edge weights = 1, self loops added)
    a = jnp.zeros((num_nodes, num_nodes), jnp.float32)
    a = a.at[edge_index[0], edge_index[1]].set(1.0)
    a = a + jnp.eye(num_nodes, dtype=jnp.float32)
    deg = jnp.sum(a, axis=1)
    d_inv_sqrt = jnp.where(deg > 0, 1.0 / jnp.sqrt(deg), 0.0)
    return d_inv_sqrt[:, None] * a * d_inv_sqrt[None, :]


def init_params(key, num_features, latent_dim, num_classes):
    params = {"convs": []}
    dims = [num_features] + list(latent_dim)
    keys = jax.random.split(key, len(latent_dim) + 2)
    for i in range(len(latent_dim)):
        w = 0.1 * jax.random.normal(keys[i], (dims[i], dims[i + 1]), jnp.float32)
        b = jnp.zeros((dims[i + 1],), jnp.float32)
        params["convs"].append((w, b))
    total = sum(latent_dim)
    params["lin1_w"] = 0.1 * jax.random.normal(keys[-2], (total, 128), jnp.float32)
    params["lin1_b"] = jnp.zeros((128,), jnp.float32)
    params["lin2_w"] = 0.1 * jax.random.normal(keys[-1], (128, num_classes), jnp.float32)
    params["lin2_b"] = jnp.zeros((num_classes,), jnp.float32)
    return params


if __name__ == "__main__":
    key = jax.random.PRNGKey(0)
    k_param, k_x = jax.random.split(key)

    num_features = 16
    latent_dim = [32, 32, 32, 1]
    num_classes = 4
    num_graphs = 2
    nodes_per_graph = 8
    num_nodes = num_graphs * nodes_per_graph

    # node features (N, F)
    x = jax.random.normal(k_x, (num_nodes, num_features), jnp.float32)

    # deterministic edges: a directed ring inside each graph (both directions)
    src, dst = [], []
    for g in range(num_graphs):
        base = g * nodes_per_graph
        for i in range(nodes_per_graph):
            a = base + i
            b = base + (i + 1) % nodes_per_graph
            src += [a, b]
            dst += [b, a]
    edge_index = jnp.array([src, dst], dtype=jnp.int32)

    adj_hat = build_normalized_adj(edge_index, num_nodes)

    # batch assignment -> one-hot pooling matrix (num_graphs, N) for global_add_pool
    batch = jnp.repeat(jnp.arange(num_graphs, dtype=jnp.int32), nodes_per_graph)
    pool = jax.nn.one_hot(batch, num_graphs, dtype=jnp.float32).T

    params = init_params(k_param, num_features, latent_dim, num_classes)

    out = gnn_forward(params, x, adj_hat, pool, num_classes)
    out = jax.block_until_ready(out)

    assert out.shape == (num_graphs, num_classes)
    # rows of log_softmax should exp-sum to 1
    assert bool(jnp.all(jnp.abs(jnp.sum(jnp.exp(out), axis=-1) - 1.0) < 1e-4))
    # validate fused bf16-matmul kernel against the pure-JAX f32 reference
    # TODO(synk): if tighter accuracy is required, keep adj_hat in f32 for the aggregation matmul.
    ref = gnn_reference(params, x, adj_hat, pool)
    assert bool(jnp.allclose(out, ref, atol=1e-1, rtol=1e-1)), (out, ref)

    print("KERNEL_OK")
</pallas_src>

<mosaic_0001>
module attributes {stable_mosaic.version = 11 : i64} {
  func.func @_fused_gnn_kernel(%arg0: i32, %arg1: memref<128x128xbf16, #tpu.memory_space<vmem>>, %arg2: memref<128x128xbf16, #tpu.memory_space<vmem>>, %arg3: memref<4x128x128xbf16, #tpu.memory_space<vmem>>, %arg4: memref<8x128xf32, #tpu.memory_space<vmem>>, %arg5: memref<8x128xbf16, #tpu.memory_space<vmem>>, %arg6: memref<512x128xbf16, #tpu.memory_space<vmem>>, %arg7: memref<128x128xbf16, #tpu.memory_space<vmem>>, %arg8: memref<8x128xf32, #tpu.memory_space<vmem>>, %arg9: memref<128x512xbf16, #tpu.memory_space<vmem>>) attributes {dimension_semantics = [#tpu.dimension_semantics<arbitrary>], iteration_bounds = array<i64: 1>, scalar_prefetch = 0 : i64, scratch_operands = 1 : i64, tpu.core_type = #tpu.core_type<tc>, window_params = [{pipeline_mode = #tpu.pipeline_mode<synchronous>, transform_indices = @transform_0, window_bounds = array<i64: 128, 128>}, {pipeline_mode = #tpu.pipeline_mode<synchronous>, transform_indices = @transform_1, window_bounds = array<i64: 128, 128>}, {pipeline_mode = #tpu.pipeline_mode<synchronous>, transform_indices = @transform_2, window_bounds = array<i64: 4, 128, 128>}, {pipeline_mode = #tpu.pipeline_mode<synchronous>, transform_indices = @transform_3, window_bounds = array<i64: 8, 128>}, {pipeline_mode = #tpu.pipeline_mode<synchronous>, transform_indices = @transform_4, window_bounds = array<i64: 8, 128>}, {pipeline_mode = #tpu.pipeline_mode<synchronous>, transform_indices = @transform_5, window_bounds = array<i64: 512, 128>}, {pipeline_mode = #tpu.pipeline_mode<synchronous>, transform_indices = @transform_6, window_bounds = array<i64: 128, 128>}, {pipeline_mode = #tpu.pipeline_mode<synchronous>, transform_indices = @transform_7, window_bounds = array<i64: 8, 128>}]} {
    %c0 = arith.constant 0 : index
    %c0_0 = arith.constant 0 : index
    %0 = vector.load %arg1[%c0, %c0_0] : memref<128x128xbf16, #tpu.memory_space<vmem>>, vector<128x128xbf16>
    %c0_1 = arith.constant 0 : index
    %c0_2 = arith.constant 0 : index
    %1 = vector.load %arg2[%c0_1, %c0_2] : memref<128x128xbf16, #tpu.memory_space<vmem>>, vector<128x128xbf16>
    %2 = tpu.iota {dimensions = array<i32: 0>} : vector<128x128xi32>
    %c16_i32 = arith.constant 16 : i32
    %3 = vector.broadcast %c16_i32 : i32 to vector<128x128xi32>
    %4 = arith.cmpi slt, %2, %3 : vector<128x128xi32>
    %c0_3 = arith.constant 0 : index
    %c0_4 = arith.constant 0 : index
    %c0_5 = arith.constant 0 : index
    %5 = vector.load %arg3[%c0_3, %c0_4, %c0_5] : memref<4x128x128xbf16, #tpu.memory_space<vmem>>, vector<1x128x128xbf16>
    %6 = vector.shape_cast %5 : vector<1x128x128xbf16> to vector<128x128xbf16>
    %c0_6 = arith.constant 0 : index
    %c0_7 = arith.constant 0 : index
    %7 = vector.load %arg4[%c0_6, %c0_7] : memref<8x128xf32, #tpu.memory_space<vmem>>, vector<1x128xf32>
    %cst = arith.constant dense<0.000000e+00> : vector<128x128xf32>
    %8 = tpu.matmul %1, %6, %cst {dimension_numbers = #tpu.dot_dimension_numbers<[1], [0], [0], [1], [0, 0, 1, 1], [], []>} : vector<128x128xbf16>, vector<128x128xbf16>, vector<128x128xf32> -> vector<128x128xf32>
    %9 = arith.truncf %8 : vector<128x128xf32> to vector<128x128xbf16>
    %cst_8 = arith.constant dense<0.000000e+00> : vector<128x128xf32>
    %10 = tpu.matmul %0, %9, %cst_8 {dimension_numbers = #tpu.dot_dimension_numbers<[1], [0], [0], [1], [0, 0, 1, 1], [], []>} : vector<128x128xbf16>, vector<128x128xbf16>, vector<128x128xf32> -> vector<128x128xf32>
    %11 = vector.broadcast %7 : vector<1x128xf32> to vector<128x128xf32>
    %12 = arith.addf %10, %11 : vector<128x128xf32>
    %13 = math.tanh %12 : vector<128x128xf32>
    %cst_9 = arith.constant 0.000000e+00 : f32
    %14 = vector.broadcast %cst_9 : f32 to vector<128x128xf32>
    %15 = arith.select %4, %13, %14 : vector<128x128xi1>, vector<128x128xf32>
    %16 = arith.truncf %15 : vector<128x128xf32> to vector<128x128xbf16>
    %c0_10 = arith.constant 0 : index
    %c0_11 = arith.constant 0 : index
    %17 = vector.load %arg9[%c0_10, %c0_11] : memref<128x512xbf16, #tpu.memory_space<vmem>>, vector<128x128xbf16>
    tpu.vector_store %arg9[%c0_10, %c0_11], %16 {strides = array<i32>} : memref<128x512xbf16, #tpu.memory_space<vmem>>, vector<128x128xbf16>,
    %c1 = arith.constant 1 : index
    %c0_12 = arith.constant 0 : index
    %c0_13 = arith.constant 0 : index
    %18 = vector.load %arg3[%c1, %c0_12, %c0_13] : memref<4x128x128xbf16, #tpu.memory_space<vmem>>, vector<1x128x128xbf16>
    %19 = vector.shape_cast %18 : vector<1x128x128xbf16> to vector<128x128xbf16>
    %c1_14 = arith.constant 1 : index
    %c0_15 = arith.constant 0 : index
    %20 = vector.load %arg4[%c1_14, %c0_15] : memref<8x128xf32, #tpu.memory_space<vmem>>, vector<1x128xf32>
    %cst_16 = arith.constant dense<0.000000e+00> : vector<128x128xf32>
    %21 = tpu.matmul %16, %19, %cst_16 {dimension_numbers = #tpu.dot_dimension_numbers<[1], [0], [0], [1], [0, 0, 1, 1], [], []>} : vector<128x128xbf16>, vector<128x128xbf16>, vector<128x128xf32> -> vector<128x128xf32>
    %22 = arith.truncf %21 : vector<128x128xf32> to vector<128x128xbf16>
    %cst_17 = arith.constant dense<0.000000e+00> : vector<128x128xf32>
    %23 = tpu.matmul %0, %22, %cst_17 {dimension_numbers = #tpu.dot_dimension_numbers<[1], [0], [0], [1], [0, 0, 1, 1], [], []>} : vector<128x128xbf16>, vector<128x128xbf16>, vector<128x128xf32> -> vector<128x128xf32>
    %24 = vector.broadcast %20 : vector<1x128xf32> to vector<128x128xf32>
    %25 = arith.addf %23, %24 : vector<128x128xf32>
    %26 = math.tanh %25 : vector<128x128xf32>
    %cst_18 = arith.constant 0.000000e+00 : f32
    %27 = vector.broadcast %cst_18 : f32 to vector<128x128xf32>
    %28 = arith.select %4, %26, %27 : vector<128x128xi1>, vector<128x128xf32>
    %29 = arith.truncf %28 : vector<128x128xf32> to vector<128x128xbf16>
    %c0_19 = arith.constant 0 : index
    %c128 = arith.constant 128 : index
    %30 = vector.load %arg9[%c0_19, %c128] : memref<128x512xbf16, #tpu.memory_space<vmem>>, vector<128x128xbf16>
    tpu.vector_store %arg9[%c0_19, %c128], %29 {strides = array<i32>} : memref<128x512xbf16, #tpu.memory_space<vmem>>, vector<128x128xbf16>,
    %c2 = arith.constant 2 : index
    %c0_20 = arith.constant 0 : index
    %c0_21 = arith.constant 0 : index
    %31 = vector.load %arg3[%c2, %c0_20, %c0_21] : memref<4x128x128xbf16, #tpu.memory_space<vmem>>, vector<1x128x128xbf16>
    %32 = vector.shape_cast %31 : vector<1x128x128xbf16> to vector<128x128xbf16>
    %c2_22 = arith.constant 2 : index
    %c0_23 = arith.constant 0 : index
    %33 = vector.load %arg4[%c2_22, %c0_23] : memref<8x128xf32, #tpu.memory_space<vmem>>, vector<1x128xf32>
    %cst_24 = arith.constant dense<0.000000e+00> : vector<128x128xf32>
    %34 = tpu.matmul %29, %32, %cst_24 {dimension_numbers = #tpu.dot_dimension_numbers<[1], [0], [0], [1], [0, 0, 1, 1], [], []>} : vector<128x128xbf16>, vector<128x128xbf16>, vector<128x128xf32> -> vector<128x128xf32>
    %35 = arith.truncf %34 : vector<128x128xf32> to vector<128x128xbf16>
    %cst_25 = arith.constant dense<0.000000e+00> : vector<128x128xf32>
    %36 = tpu.matmul %0, %35, %cst_25 {dimension_numbers = #tpu.dot_dimension_numbers<[1], [0], [0], [1], [0, 0, 1, 1], [], []>} : vector<128x128xbf16>, vector<128x128xbf16>, vector<128x128xf32> -> vector<128x128xf32>
    %37 = vector.broadcast %33 : vector<1x128xf32> to vector<128x128xf32>
    %38 = arith.addf %36, %37 : vector<128x128xf32>
    %39 = math.tanh %38 : vector<128x128xf32>
    %cst_26 = arith.constant 0.000000e+00 : f32
    %40 = vector.broadcast %cst_26 : f32 to vector<128x128xf32>
    %41 = arith.select %4, %39, %40 : vector<128x128xi1>, vector<128x128xf32>
    %42 = arith.truncf %41 : vector<128x128xf32> to vector<128x128xbf16>
    %c0_27 = arith.constant 0 : index
    %c256 = arith.constant 256 : index
    %43 = vector.load %arg9[%c0_27, %c256] : memref<128x512xbf16, #tpu.memory_space<vmem>>, vector<128x128xbf16>
    tpu.vector_store %arg9[%c0_27, %c256], %42 {strides = array<i32>} : memref<128x512xbf16, #tpu.memory_space<vmem>>, vector<128x128xbf16>,
    %c3 = arith.constant 3 : index
    %c0_28 = arith.constant 0 : index
    %c0_29 = arith.constant 0 : index
    %44 = vector.load %arg3[%c3, %c0_28, %c0_29] : memref<4x128x128xbf16, #tpu.memory_space<vmem>>, vector<1x128x128xbf16>
    %45 = vector.shape_cast %44 : vector<1x128x128xbf16> to vector<128x128xbf16>
    %c3_30 = arith.constant 3 : index
    %c0_31 = arith.constant 0 : index
    %46 = vector.load %arg4[%c3_30, %c0_31] : memref<8x128xf32, #tpu.memory_space<vmem>>, vector<1x128xf32>
    %cst_32 = arith.constant dense<0.000000e+00> : vector<128x128xf32>
    %47 = tpu.matmul %42, %45, %cst_32 {dimension_numbers = #tpu.dot_dimension_numbers<[1], [0], [0], [1], [0, 0, 1, 1], [], []>} : vector<128x128xbf16>, vector<128x128xbf16>, vector<128x128xf32> -> vector<128x128xf32>
    %48 = arith.truncf %47 : vector<128x128xf32> to vector<128x128xbf16>
    %cst_33 = arith.constant dense<0.000000e+00> : vector<128x128xf32>
    %49 = tpu.matmul %0, %48, %cst_33 {dimension_numbers = #tpu.dot_dimension_numbers<[1], [0], [0], [1], [0, 0, 1, 1], [], []>} : vector<128x128xbf16>, vector<128x128xbf16>, vector<128x128xf32> -> vector<128x128xf32>
    %50 = vector.broadcast %46 : vector<1x128xf32> to vector<128x128xf32>
    %51 = arith.addf %49, %50 : vector<128x128xf32>
    %52 = math.tanh %51 : vector<128x128xf32>
    %cst_34 = arith.constant 0.000000e+00 : f32
    %53 = vector.broadcast %cst_34 : f32 to vector<128x128xf32>
    %54 = arith.select %4, %52, %53 : vector<128x128xi1>, vector<128x128xf32>
    %55 = arith.truncf %54 : vector<128x128xf32> to vector<128x128xbf16>
    %c0_35 = arith.constant 0 : index
    %c384 = arith.constant 384 : index
    %56 = vector.load %arg9[%c0_35, %c384] : memref<128x512xbf16, #tpu.memory_space<vmem>>, vector<128x128xbf16>
    tpu.vector_store %arg9[%c0_35, %c384], %55 {strides = array<i32>} : memref<128x512xbf16, #tpu.memory_space<vmem>>, vector<128x128xbf16>,
    %c0_36 = arith.constant 0 : index
    %c0_37 = arith.constant 0 : index
    %57 = vector.load %arg5[%c0_36, %c0_37] : memref<8x128xbf16, #tpu.memory_space<vmem>>, vector<8x128xbf16>
    %c0_38 = arith.constant 0 : index
    %c0_39 = arith.constant 0 : index
    %58 = vector.load %arg9[%c0_38, %c0_39] : memref<128x512xbf16, #tpu.memory_space<vmem>>, vector<128x512xbf16>
    %cst_40 = arith.constant dense<0.000000e+00> : vector<8x512xf32>
    %59 = tpu.matmul %57, %58, %cst_40 {dimension_numbers = #tpu.dot_dimension_numbers<[1], [0], [0], [1], [0, 0, 1, 1], [], []>} : vector<8x128xbf16>, vector<128x512xbf16>, vector<8x512xf32> -> vector<8x512xf32>
    %c4 = arith.constant 4 : index
    %c0_41 = arith.constant 0 : index
    %60 = vector.load %arg4[%c4, %c0_41] : memref<8x128xf32, #tpu.memory_space<vmem>>, vector<1x128xf32>
    %61 = arith.truncf %59 : vector<8x512xf32> to vector<8x512xbf16>
    %c0_42 = arith.constant 0 : index
    %c0_43 = arith.constant 0 : index
    %62 = vector.load %arg6[%c0_42, %c0_43] : memref<512x128xbf16, #tpu.memory_space<vmem>>, vector<512x128xbf16>
    %cst_44 = arith.constant dense<0.000000e+00> : vector<8x128xf32>
    %63 = tpu.matmul %61, %62, %cst_44 {dimension_numbers = #tpu.dot_dimension_numbers<[1], [0], [0], [1], [0, 0, 1, 1], [], []>} : vector<8x512xbf16>, vector<512x128xbf16>, vector<8x128xf32> -> vector<8x128xf32>
    %64 = vector.broadcast %60 : vector<1x128xf32> to vector<8x128xf32>
    %65 = arith.addf %63, %64 : vector<8x128xf32>
    %cst_45 = arith.constant 0.000000e+00 : f32
    %66 = vector.broadcast %cst_45 : f32 to vector<8x128xf32>
    %67 = arith.maximumf %65, %66 : vector<8x128xf32>
    %c5 = arith.constant 5 : index
    %c0_46 = arith.constant 0 : index
    %68 = vector.load %arg4[%c5, %c0_46] : memref<8x128xf32, #tpu.memory_space<vmem>>, vector<1x128xf32>
    %69 = arith.truncf %67 : vector<8x128xf32> to vector<8x128xbf16>
    %c0_47 = arith.constant 0 : index
    %c0_48 = arith.constant 0 : index
    %70 = vector.load %arg7[%c0_47, %c0_48] : memref<128x128xbf16, #tpu.memory_space<vmem>>, vector<128x128xbf16>
    %cst_49 = arith.constant dense<0.000000e+00> : vector<8x128xf32>
    %71 = tpu.matmul %69, %70, %cst_49 {dimension_numbers = #tpu.dot_dimension_numbers<[1], [0], [0], [1], [0, 0, 1, 1], [], []>} : vector<8x128xbf16>, vector<128x128xbf16>, vector<8x128xf32> -> vector<8x128xf32>
    %72 = vector.broadcast %68 : vector<1x128xf32> to vector<8x128xf32>
    %73 = arith.addf %71, %72 : vector<8x128xf32>
    %cst_50 = arith.constant dense<0xFF800000> : vector<8xf32>
    %74 = vector.multi_reduction <maximumf>, %73, %cst_50 [1] : vector<8x128xf32> to vector<8xf32>
    %75 = vector.shape_cast %74 : vector<8xf32> to vector<8x1xf32>
    %76 = vector.broadcast %75 : vector<8x1xf32> to vector<8x128xf32>
    %77 = arith.subf %73, %76 : vector<8x128xf32>
    %78 = math.exp %77 : vector<8x128xf32>
    %cst_51 = arith.constant dense<0.000000e+00> : vector<8xf32>
    %79 = vector.multi_reduction <add>, %78, %cst_51 [1] : vector<8x128xf32> to vector<8xf32>
    %80 = vector.shape_cast %79 : vector<8xf32> to vector<8x1xf32>
    %81 = math.log %80 : vector<8x1xf32>
    %82 = vector.broadcast %81 : vector<8x1xf32> to vector<8x128xf32>
    %83 = arith.subf %77, %82 : vector<8x128xf32>
    %c0_52 = arith.constant 0 : index
    %c0_53 = arith.constant 0 : index
    %84 = vector.load %arg8[%c0_52, %c0_53] : memref<8x128xf32, #tpu.memory_space<vmem>>, vector<8x128xf32>
    tpu.vector_store %arg8[%c0_52, %c0_53], %83 {strides = array<i32>} : memref<8x128xf32, #tpu.memory_space<vmem>>, vector<8x128xf32>,
    return
  }
  func.func @transform_0(%arg0: i32) -> (i32, i32) {
    %c0_i32 = arith.constant 0 : i32
    %c0_i32_0 = arith.constant 0 : i32
    %c0_i32_1 = arith.constant 0 : i32
    return %c0_i32, %c0_i32_0 : i32, i32
  }
  func.func @transform_1(%arg0: i32) -> (i32, i32) {
    %c0_i32 = arith.constant 0 : i32
    %c0_i32_0 = arith.constant 0 : i32
    %c0_i32_1 = arith.constant 0 : i32
    return %c0_i32, %c0_i32_0 : i32, i32
  }
  func.func @transform_2(%arg0: i32) -> (i32, i32, i32) {
    %c0_i32 = arith.constant 0 : i32
    %c0_i32_0 = arith.constant 0 : i32
    %c0_i32_1 = arith.constant 0 : i32
    %c0_i32_2 = arith.constant 0 : i32
    return %c0_i32, %c0_i32_0, %c0_i32_1 : i32, i32, i32
  }
  func.func @transform_3(%arg0: i32) -> (i32, i32) {
    %c0_i32 = arith.constant 0 : i32
    %c0_i32_0 = arith.constant 0 : i32
    %c0_i32_1 = arith.constant 0 : i32
    return %c0_i32, %c0_i32_0 : i32, i32
  }
  func.func @transform_4(%arg0: i32) -> (i32, i32) {
    %c0_i32 = arith.constant 0 : i32
    %c0_i32_0 = arith.constant 0 : i32
    %c0_i32_1 = arith.constant 0 : i32
    return %c0_i32, %c0_i32_0 : i32, i32
  }
  func.func @transform_5(%arg0: i32) -> (i32, i32) {
    %c0_i32 = arith.constant 0 : i32
    %c0_i32_0 = arith.constant 0 : i32
    %c0_i32_1 = arith.constant 0 : i32
    return %c0_i32, %c0_i32_0 : i32, i32
  }
  func.func @transform_6(%arg0: i32) -> (i32, i32) {
    %c0_i32 = arith.constant 0 : i32
    %c0_i32_0 = arith.constant 0 : i32
    %c0_i32_1 = arith.constant 0 : i32
    return %c0_i32, %c0_i32_0 : i32, i32
  }
  func.func @transform_7(%arg0: i32) -> (i32, i32) {
    %c0_i32 = arith.constant 0 : i32
    %c0_i32_0 = arith.constant 0 : i32
    %c0_i32_1 = arith.constant 0 : i32
    return %c0_i32, %c0_i32_0 : i32, i32
  }
}

</mosaic_0001>

<llo_original>
// kernel: tpu_custom_call.1
$region0: #{tpu_custom_call.1}
  #allocation0 [shape = 'u32[]', space=smem, size = 0x4, offset = 0x4, fixed_abs, tag = 'smem constant byte address 0x4 - core index']
  #allocation1 [shape = 'u32[144,128]{1,0:T(1,128)}', space=vmem, size = 0x12000, scoped, tag = 'internal scratch']
  #allocation2 [shape = 'bf16[128,512]{1,0:T(16,128)(2,1)}', space=vmem, size = 0x20000, scoped, tag = 'scratch operand']
  %s0 = inlined_call_operand.hbm [shape: bf16[128,128], index: 0, kind: input, shape index: {}]
  %s1 = inlined_call_operand.hbm [shape: bf16[128,128], index: 1, kind: input, shape index: {}]
  %s2 = inlined_call_operand.hbm [shape: bf16[4,128,128], index: 2, kind: input, shape index: {}]
  %s3 = inlined_call_operand.vmem [shape: f32[8,128], index: 3, kind: input, shape index: {}]
  %s4 = inlined_call_operand.vmem [shape: bf16[8,128], index: 4, kind: input, shape index: {}]
  %s5 = inlined_call_operand.hbm [shape: bf16[512,128], index: 5, kind: input, shape index: {}]
  %s6 = inlined_call_operand.hbm [shape: bf16[128,128], index: 6, kind: input, shape index: {}]
  %s7 = inlined_call_operand.hbm [shape: f32[8,128], index: 7, kind: output, shape index: {}]
  %s8 = sld [smem:[#allocation0]]
  $region58: #{tpu_custom_call.1} parent=0
    _
  %s10 = ssub.s32 1, %s8
  %s11 = scalar_select 0, %s10, %s8
  $region1: #{tpu_custom_call.1} parent=0
    #allocation3 [shape = 'u8[32768]{0}', space=vmem, size = 0x8000, scoped, tag = 'input window, operand 0, single buffered']
    #allocation4 [shape = 's32[1]{0}', space=sflag, size = 0x4, scoped, tag = 'scoped memory for tpu_custom_call.1']
    #allocation5 [shape = 's32[1]{0}', space=sflag, size = 0x4, scoped, tag = 'scoped memory for tpu_custom_call.1']
    #allocation6 [shape = 'u8[32768]{0}', space=vmem, size = 0x8000, scoped, tag = 'input window, operand 1, single buffered']
    #allocation7 [shape = 's32[1]{0}', space=sflag, size = 0x4, scoped, tag = 'scoped memory for tpu_custom_call.1']
    #allocation8 [shape = 'u8[131072]{0}', space=vmem, size = 0x20000, scoped, tag = 'input window, operand 2, single buffered']
    #allocation9 [shape = 'u8[131072]{0}', space=vmem, size = 0x20000, scoped, tag = 'input window, operand 5, single buffered']
    #allocation10 [shape = 's32[1]{0}', space=sflag, size = 0x4, scoped, tag = 'scoped memory for tpu_custom_call.1']
    #allocation11 [shape = 'u8[32768]{0}', space=vmem, size = 0x8000, scoped, tag = 'input window, operand 6, single buffered']
    #allocation12 [shape = 'u8[4096]{0}', space=vmem, size = 0x1000, scoped, tag = 'output window, operand 0, single buffered']
    %12 = vsyncpa [#allocation4], 0
    %13 = vsyncpa [#allocation7], 0
    %14 = vsyncpa [#allocation10], 0
    %15 = vsyncpa [#allocation5], 0
    // Predicated region
    $region2: #{tpu_custom_call.1} parent=1 // pred_check
      _
    $region3: #{tpu_custom_call.1} parent=1 // pred_check_branch
      %17 = sbr.rel (0) target = $region5
    $region4: #{tpu_custom_call.1} parent=1 // pred_region
      %s19 = ssub.s32 1024, 1024
      %20 = vsyncadd [#allocation4], %s19
      %s21 = sshll.u32 [#allocation3], 4
      %s22 = int_to_ptr.vmem [resolvable:$true] %s21
      %27 = dma.hbm_to_vmem [thread:$0]  %s0, 1024, %s22, [#allocation4], 64, 64, 4
    $region5: #{tpu_custom_call.1} parent=1 // pred_fallthru
      _
    // Predicated region
    $region6: #{tpu_custom_call.1} parent=1 // pred_check
      _
    $region7: #{tpu_custom_call.1} parent=1 // pred_check_branch
      %29 = sbr.rel (0) target = $region9
    $region8: #{tpu_custom_call.1} parent=1 // pred_region
      %s31 = ssub.s32 1024, 1024
      %32 = vsyncadd [#allocation7], %s31
      %s33 = sshll.u32 [#allocation6], 4
      %s34 = int_to_ptr.vmem [resolvable:$true] %s33
      %39 = dma.hbm_to_vmem [thread:$0]  %s1, 1024, %s34, [#allocation7], 64, 64, 4
    $region9: #{tpu_custom_call.1} parent=1 // pred_fallthru
      _
    // Predicated region
    $region10: #{tpu_custom_call.1} parent=1 // pred_check
      _
    $region11: #{tpu_custom_call.1} parent=1 // pred_check_branch
      %41 = sbr.rel (0) target = $region13
    $region12: #{tpu_custom_call.1} parent=1 // pred_region
      %s43 = ssub.s32 4096, 4096
      %44 = vsyncadd [#allocation7], %s43
      %s45 = sshll.u32 [#allocation8], 4
      %s46 = int_to_ptr.vmem [resolvable:$true] %s45
      %51 = dma.hbm_to_vmem [thread:$0]  %s2, 4096, %s46, [#allocation7], 64, 64, 4
    $region13: #{tpu_custom_call.1} parent=1 // pred_fallthru
      _
    // Predicated region
    $region14: #{tpu_custom_call.1} parent=1 // pred_check
      _
    $region15: #{tpu_custom_call.1} parent=1 // pred_check_branch
      %53 = sbr.rel (0) target = $region17
    $region16: #{tpu_custom_call.1} parent=1 // pred_region
      _
    $region17: #{tpu_custom_call.1} parent=1 // pred_fallthru
      _
    // Predicated region
    $region18: #{tpu_custom_call.1} parent=1 // pred_check
      _
    $region19: #{tpu_custom_call.1} parent=1 // pred_check_branch
      %55 = sbr.rel (0) target = $region21
    $region20: #{tpu_custom_call.1} parent=1 // pred_region
      _
    $region21: #{tpu_custom_call.1} parent=1 // pred_fallthru
      _
    // Predicated region
    $region22: #{tpu_custom_call.1} parent=1 // pred_check
      _
    $region23: #{tpu_custom_call.1} parent=1 // pred_check_branch
      %57 = sbr.rel (0) target = $region25
    $region24: #{tpu_custom_call.1} parent=1 // pred_region
      %s59 = ssub.s32 4096, 4096
      %60 = vsyncadd [#allocation10], %s59
      %s61 = sshll.u32 [#allocation9], 4
      %s62 = int_to_ptr.vmem [resolvable:$true] %s61
      %67 = dma.hbm_to_vmem [thread:$0]  %s5, 4096, %s62, [#allocation10], 64, 64, 4
    $region25: #{tpu_custom_call.1} parent=1 // pred_fallthru
      _
    // Predicated region
    $region26: #{tpu_custom_call.1} parent=1 // pred_check
      _
    $region27: #{tpu_custom_call.1} parent=1 // pred_check_branch
      %69 = sbr.rel (0) target = $region29
    $region28: #{tpu_custom_call.1} parent=1 // pred_region
      %s71 = ssub.s32 1024, 1024
      %72 = vsyncadd [#allocation10], %s71
      %s73 = sshll.u32 [#allocation11], 4
      %s74 = int_to_ptr.vmem [resolvable:$true] %s73
      %79 = dma.hbm_to_vmem [thread:$0]  %s6, 1024, %s74, [#allocation10], 64, 64, 4
    $region29: #{tpu_custom_call.1} parent=1 // pred_fallthru
      _
    // Predicated region
    $region30: #{tpu_custom_call.1} parent=1 // pred_check
      _
    $region31: #{tpu_custom_call.1} parent=1 // pred_check_branch
      %81 = sbr.rel (0) target = $region33
    $region32: #{tpu_custom_call.1} parent=1 // pred_region
      %82 = dma.done [#allocation4], 1024
    $region33: #{tpu_custom_call.1} parent=1 // pred_fallthru
      _
    // Predicated region
    $region34: #{tpu_custom_call.1} parent=1 // pred_check
      _
    $region35: #{tpu_custom_call.1} parent=1 // pred_check_branch
      %84 = sbr.rel (0) target = $region37
    $region36: #{tpu_custom_call.1} parent=1 // pred_region
      %85 = dma.done [#allocation7], 1024
    $region37: #{tpu_custom_call.1} parent=1 // pred_fallthru
      _
    // Predicated region
    $region38: #{tpu_custom_call.1} parent=1 // pred_check
      _
    $region39: #{tpu_custom_call.1} parent=1 // pred_check_branch
      %87 = sbr.rel (0) target = $region41
    $region40: #{tpu_custom_call.1} parent=1 // pred_region
      %88 = dma.done [#allocation7], 4096
    $region41: #{tpu_custom_call.1} parent=1 // pred_fallthru
      _
    // Predicated region
    $region42: #{tpu_custom_call.1} parent=1 // pred_check
      _
    $region43: #{tpu_custom_call.1} parent=1 // pred_check_branch
      %90 = sbr.rel (0) target = $region45
    $region44: #{tpu_custom_call.1} parent=1 // pred_region
      %91 = dma.done [#allocation10], 4096
    $region45: #{tpu_custom_call.1} parent=1 // pred_fallthru
      _
    // Predicated region
    $region46: #{tpu_custom_call.1} parent=1 // pred_check
      _
    $region47: #{tpu_custom_call.1} parent=1 // pred_check_branch
      %93 = sbr.rel (0) target = $region49
    $region48: #{tpu_custom_call.1} parent=1 // pred_region
      %94 = dma.done [#allocation10], 1024
    $region49: #{tpu_custom_call.1} parent=1 // pred_fallthru
      _
    %v96 = vld [vmem:[#allocation3] sm:$0xf]
    %v97 = vld [vmem:[#allocation3 + $0x4] sm:$0xf]
    %v98 = vld [vmem:[#allocation3 + $0x8] sm:$0xf]
    %v99 = vld [vmem:[#allocation3 + $0xc] sm:$0xf]
    %v100 = vld [vmem:[#allocation3 + $0x10] sm:$0xf]
    %v101 = vld [vmem:[#allocation3 + $0x14] sm:$0xf]
    %v102 = vld [vmem:[#allocation3 + $0x18] sm:$0xf]
    %v103 = vld [vmem:[#allocation3 + $0x1c] sm:$0xf]
    %v104 = vld [vmem:[#allocation3 + $0x20] sm:$0xf]
    %v105 = vld [vmem:[#allocation3 + $0x24] sm:$0xf]
    %v106 = vld [vmem:[#allocation3 + $0x28] sm:$0xf]
    %v107 = vld [vmem:[#allocation3 + $0x2c] sm:$0xf]
    %v108 = vld [vmem:[#allocation3 + $0x30] sm:$0xf]
    %v109 = vld [vmem:[#allocation3 + $0x34] sm:$0xf]
    %v110 = vld [vmem:[#allocation3 + $0x38] sm:$0xf]
    %v111 = vld [vmem:[#allocation3 + $0x3c] sm:$0xf]
    %v112 = vld [vmem:[#allocation6] sm:$0xf]
    %v113 = vld [vmem:[#allocation6 + $0x4] sm:$0xf]
    %v114 = vld [vmem:[#allocation6 + $0x8] sm:$0xf]
    %v115 = vld [vmem:[#allocation6 + $0xc] sm:$0xf]
    %v116 = vld [vmem:[#allocation6 + $0x10] sm:$0xf]
    %v117 = vld [vmem:[#allocation6 + $0x14] sm:$0xf]
    %v118 = vld [vmem:[#allocation6 + $0x18] sm:$0xf]
    %v119 = vld [vmem:[#allocation6 + $0x1c] sm:$0xf]
    %v120 = vld [vmem:[#allocation6 + $0x20] sm:$0xf]
    %v121 = vld [vmem:[#allocation6 + $0x24] sm:$0xf]
    %v122 = vld [vmem:[#allocation6 + $0x28] sm:$0xf]
    %v123 = vld [vmem:[#allocation6 + $0x2c] sm:$0xf]
    %v124 = vld [vmem:[#allocation6 + $0x30] sm:$0xf]
    %v125 = vld [vmem:[#allocation6 + $0x34] sm:$0xf]
    %v126 = vld [vmem:[#allocation6 + $0x38] sm:$0xf]
    %v127 = vld [vmem:[#allocation6 + $0x3c] sm:$0xf]
    %v128 = vlaneseq
    %v129 = vshrl.u32 %v128, 7
    %v130 = vadd.s32 %v129, 8
    %v131 = vadd.s32 %v129, 16
    %v132 = vadd.s32 %v129, 24
    %v133 = vadd.s32 %v129, 32
    %v134 = vadd.s32 %v129, 40
    %v135 = vadd.s32 %v129, 48
    %v136 = vadd.s32 %v129, 56
    %v137 = vadd.s32 %v129, 64
    %v138 = vadd.s32 %v129, 72
    %v139 = vadd.s32 %v129, 80
    %v140 = vadd.s32 %v129, 88
    %v141 = vadd.s32 %v129, 96
    %v142 = vadd.s32 %v129, 104
    %v143 = vadd.s32 %v129, 112
    %v144 = vadd.s32 %v129, 120
    %vm145 = vcmp.lt.s32.totalorder %v129, 16
    %vm146 = vcmp.lt.s32.totalorder %v130, 16
    %vm147 = vcmp.lt.s32.totalorder %v131, 16
    %vm148 = vcmp.lt.s32.totalorder %v132, 16
    %vm149 = vcmp.lt.s32.totalorder %v133, 16
    %vm150 = vcmp.lt.s32.totalorder %v134, 16
    %vm151 = vcmp.lt.s32.totalorder %v135, 16
    %vm152 = vcmp.lt.s32.totalorder %v136, 16
    %vm153 = vcmp.lt.s32.totalorder %v137, 16
    %vm154 = vcmp.lt.s32.totalorder %v138, 16
    %vm155 = vcmp.lt.s32.totalorder %v139, 16
    %vm156 = vcmp.lt.s32.totalorder %v140, 16
    %vm157 = vcmp.lt.s32.totalorder %v141, 16
    %vm158 = vcmp.lt.s32.totalorder %v142, 16
    %vm159 = vcmp.lt.s32.totalorder %v143, 16
    %vm160 = vcmp.lt.s32.totalorder %v144, 16
    %v161 = vld [vmem:[#allocation8] sm:$0xf]
    %v162 = vld [vmem:[#allocation8 + $0x4] sm:$0xf]
    %v163 = vld [vmem:[#allocation8 + $0x8] sm:$0xf]
    %v164 = vld [vmem:[#allocation8 + $0xc] sm:$0xf]
    %v165 = vld [vmem:[#allocation8 + $0x10] sm:$0xf]
    %v166 = vld [vmem:[#allocation8 + $0x14] sm:$0xf]
    %v167 = vld [vmem:[#allocation8 + $0x18] sm:$0xf]
    %v168 = vld [vmem:[#allocation8 + $0x1c] sm:$0xf]
    %v169 = vld [vmem:[#allocation8 + $0x20] sm:$0xf]
    %v170 = vld [vmem:[#allocation8 + $0x24] sm:$0xf]
    %v171 = vld [vmem:[#allocation8 + $0x28] sm:$0xf]
    %v172 = vld [vmem:[#allocation8 + $0x2c] sm:$0xf]
    %v173 = vld [vmem:[#allocation8 + $0x30] sm:$0xf]
    %v174 = vld [vmem:[#allocation8 + $0x34] sm:$0xf]
    %v175 = vld [vmem:[#allocation8 + $0x38] sm:$0xf]
    %v176 = vld [vmem:[#allocation8 + $0x3c] sm:$0xf]
    %v177 = vld [vmem:[%s3] sm:$0x1]
    %v194 = vunpack.c.l.b16 %v112
    %v195 = vunpack.c.l.b16 %v113
    %v196 = vunpack.c.l.b16 %v114
    %v197 = vunpack.c.l.b16 %v115
    %v198 = vunpack.c.l.b16 %v116
    %v199 = vunpack.c.l.b16 %v117
    %v200 = vunpack.c.l.b16 %v118
    %v201 = vunpack.c.l.b16 %v119
    %v202 = vunpack.c.l.b16 %v120
    %v203 = vunpack.c.l.b16 %v121
    %v204 = vunpack.c.l.b16 %v122
    %v205 = vunpack.c.l.b16 %v123
    %v206 = vunpack.c.l.b16 %v124
    %v207 = vunpack.c.l.b16 %v125
    %v208 = vunpack.c.l.b16 %v126
    %v209 = vunpack.c.l.b16 %v127
    %v210 = vpack.c.b16 %v195, %v194
    %v211 = vpack.c.b16 %v197, %v196
    %v212 = vpack.c.b16 %v199, %v198
    %v213 = vpack.c.b16 %v201, %v200
    %v214 = vpack.c.b16 %v203, %v202
    %v215 = vpack.c.b16 %v205, %v204
    %v216 = vpack.c.b16 %v207, %v206
    %v217 = vpack.c.b16 %v209, %v208
    %v242 = vunpack.c.l.b16 %v161
    %v243 = vunpack.c.l.b16 %v162
    %v244 = vunpack.c.l.b16 %v163
    %v245 = vunpack.c.l.b16 %v164
    %v246 = vunpack.c.l.b16 %v165
    %v247 = vunpack.c.l.b16 %v166
    %v248 = vunpack.c.l.b16 %v167
    %v249 = vunpack.c.l.b16 %v168
    %v250 = vunpack.c.l.b16 %v169
    %v251 = vunpack.c.l.b16 %v170
    %v252 = vunpack.c.l.b16 %v171
    %v253 = vunpack.c.l.b16 %v172
    %v254 = vunpack.c.l.b16 %v173
    %v255 = vunpack.c.l.b16 %v174
    %v256 = vunpack.c.l.b16 %v175
    %v257 = vunpack.c.l.b16 %v176
    %v258 = vpack.c.b16 %v243, %v242
    %v259 = vpack.c.b16 %v245, %v244
    %v260 = vpack.c.b16 %v247, %v246
    %v261 = vpack.c.b16 %v249, %v248
    %v262 = vpack.c.b16 %v251, %v250
    %v263 = vpack.c.b16 %v253, %v252
    %v264 = vpack.c.b16 %v255, %v254
    %v265 = vpack.c.b16 %v257, %v256
    %274 = vmatprep.subr.bf16.mxu0 0
    %275 = vmatpush1.bf16.msra.mxu0 %v258
    %276 = vmatprep.subr.bf16.mxu0 0
    %277 = vmatpush1.bf16.msra.mxu0 %v259
    %278 = vmatprep.subr.bf16.mxu0 0
    %279 = vmatpush1.bf16.msra.mxu0 %v260
    %280 = vmatprep.subr.bf16.mxu0 0
    %281 = vmatpush1.bf16.msra.mxu0 %v261
    %282 = vmatprep.subr.bf16.mxu0 0
    %283 = vmatpush1.bf16.msra.mxu0 %v262
    %284 = vmatprep.subr.bf16.mxu0 0
    %285 = vmatpush1.bf16.msra.mxu0 %v263
    %286 = vmatprep.subr.bf16.mxu0 0
    %287 = vmatpush1.bf16.msra.mxu0 %v264
    %288 = vmatprep.subr.bf16.mxu0 0
    %289 = vmatpush1.bf16.msra.mxu0 %v265
    %290 = vmatprep.subr.bf16.mxu0 0
    %291 = vmatpush1.bf16.msra.mxu0 0
    %292 = vmatprep.subr.bf16.mxu0 0
    %293 = vmatpush1.bf16.msra.mxu0 0
    %294 = vmatprep.subr.bf16.mxu0 0
    %295 = vmatpush1.bf16.msra.mxu0 0
    %296 = vmatprep.subr.bf16.mxu0 0
    %297 = vmatpush1.bf16.msra.mxu0 0
    %298 = vmatprep.subr.bf16.mxu0 0
    %299 = vmatpush1.bf16.msra.mxu0 0
    %300 = vmatprep.subr.bf16.mxu0 0
    %301 = vmatpush1.bf16.msra.mxu0 0
    %302 = vmatprep.subr.bf16.mxu0 0
    %303 = vmatpush1.bf16.msra.mxu0 0
    %304 = vmatprep.subr.bf16.mxu0 0
    %305 = vmatpush1.bf16.msra.mxu0 0
    %306 = vmatprep.mubr.bf16.mxu0 0
    %307 = vmatmul.mubr.bf16.gmra.mrb[0].mxu0 %v210
    %v308 = vpop.f32.mrb[0].mxu0
    %v309 = vadd.f32 0.0, %v308
    %v310 = vpop.f32.mrb[0].mxu0
    %v311 = vpop.f32.mrb[0].mxu0
    %v312 = vadd.f32 0.0, %v311
    %v313 = vpop.f32.mrb[0].mxu0
    %314 = vmatprep.mubr.bf16.mxu0 0
    %315 = vmatmul.mubr.bf16.gmra.mrb[0].mxu0 %v211
    %v316 = vpop.f32.mrb[0].mxu0
    %v317 = vadd.f32 0.0, %v316
    %v318 = vpop.f32.mrb[0].mxu0
    %v319 = vpop.f32.mrb[0].mxu0
    %v320 = vadd.f32 0.0, %v319
    %v321 = vpop.f32.mrb[0].mxu0
    %322 = vmatprep.mubr.bf16.mxu0 0
    %323 = vmatmul.mubr.bf16.gmra.mrb[0].mxu0 %v212
    %v324 = vpop.f32.mrb[0].mxu0
    %v325 = vadd.f32 0.0, %v324
    %v326 = vpop.f32.mrb[0].mxu0
    %v327 = vpop.f32.mrb[0].mxu0
    %v328 = vadd.f32 0.0, %v327
    %v329 = vpop.f32.mrb[0].mxu0
    %330 = vmatprep.mubr.bf16.mxu0 0
    %331 = vmatmul.mubr.bf16.gmra.mrb[0].mxu0 %v213
    %v332 = vpop.f32.mrb[0].mxu0
    %v333 = vadd.f32 0.0, %v332
    %v334 = vpop.f32.mrb[0].mxu0
    %v335 = vpop.f32.mrb[0].mxu0
    %v336 = vadd.f32 0.0, %v335
    %v337 = vpop.f32.mrb[0].mxu0
    %338 = vmatprep.mubr.bf16.mxu0 0
    %339 = vmatmul.mubr.bf16.gmra.mrb[0].mxu0 %v214
    %v340 = vpop.f32.mrb[0].mxu0
    %v341 = vadd.f32 0.0, %v340
    %v342 = vpop.f32.mrb[0].mxu0
    %v343 = vpop.f32.mrb[0].mxu0
    %v344 = vadd.f32 0.0, %v343
    %v345 = vpop.f32.mrb[0].mxu0
    %346 = vmatprep.mubr.bf16.mxu0 0
    %347 = vmatmul.mubr.bf16.gmra.mrb[0].mxu0 %v215
    %v348 = vpop.f32.mrb[0].mxu0
    %v349 = vadd.f32 0.0, %v348
    %v350 = vpop.f32.mrb[0].mxu0
    %v351 = vpop.f32.mrb[0].mxu0
    %v352 = vadd.f32 0.0, %v351
    %v353 = vpop.f32.mrb[0].mxu0
    %354 = vmatprep.mubr.bf16.mxu0 0
    %355 = vmatmul.mubr.bf16.gmra.mrb[0].mxu0 %v216
    %v356 = vpop.f32.mrb[0].mxu0
    %v357 = vadd.f32 0.0, %v356
    %v358 = vpop.f32.mrb[0].mxu0
    %v359 = vpop.f32.mrb[0].mxu0
    %v360 = vadd.f32 0.0, %v359
    %v361 = vpop.f32.mrb[0].mxu0
    %362 = vmatprep.mubr.bf16.mxu0 0
    %363 = vmatmul.mubr.bf16.gmra.mrb[0].mxu0 %v217
    %v364 = vpop.f32.mrb[0].mxu0
    %v365 = vadd.f32 0.0, %v364
    %v366 = vpop.f32.mrb[0].mxu0
    %v367 = vpop.f32.mrb[0].mxu0
    %v368 = vadd.f32 0.0, %v367
    %v369 = vpop.f32.mrb[0].mxu0
    %370 = vdwg.mxu0
    %v371 = vpack.c.bf16 %v312, %v309
    %v372 = vpack.c.bf16 %v320, %v317
    %v373 = vpack.c.bf16 %v328, %v325
    %v374 = vpack.c.bf16 %v336, %v333
    %v375 = vpack.c.bf16 %v344, %v341
    %v376 = vpack.c.bf16 %v352, %v349
    %v377 = vpack.c.bf16 %v360, %v357
    %v378 = vpack.c.bf16 %v368, %v365
    %v379 = vlaneseq
    %v380 = vshrl.u32 %v379, 7
    %v381 = vsub.s32 0, %v380
    %v382 = vrot.slane %v177, %v381
    %v399 = vunpack.c.l.b16 %v96
    %v400 = vunpack.c.l.b16 %v97
    %v401 = vunpack.c.l.b16 %v98
    %v402 = vunpack.c.l.b16 %v99
    %v403 = vunpack.c.l.b16 %v100
    %v404 = vunpack.c.l.b16 %v101
    %v405 = vunpack.c.l.b16 %v102
    %v406 = vunpack.c.l.b16 %v103
    %v407 = vunpack.c.l.b16 %v104
    %v408 = vunpack.c.l.b16 %v105
    %v409 = vunpack.c.l.b16 %v106
    %v410 = vunpack.c.l.b16 %v107
    %v411 = vunpack.c.l.b16 %v108
    %v412 = vunpack.c.l.b16 %v109
    %v413 = vunpack.c.l.b16 %v110
    %v414 = vunpack.c.l.b16 %v111
    %v415 = vpack.c.b16 %v400, %v399
    %v416 = vpack.c.b16 %v402, %v401
    %v417 = vpack.c.b16 %v404, %v403
    %v418 = vpack.c.b16 %v406, %v405
    %v419 = vpack.c.b16 %v408, %v407
    %v420 = vpack.c.b16 %v410, %v409
    %v421 = vpack.c.b16 %v412, %v411
    %v422 = vpack.c.b16 %v414, %v413
    %431 = vmatprep.subr.bf16.mxu0 0
    %432 = vmatpush1.bf16.msra.mxu0 %v371
    %433 = vmatprep.subr.bf16.mxu0 0
    %434 = vmatpush1.bf16.msra.mxu0 %v372
    %435 = vmatprep.subr.bf16.mxu0 0
    %436 = vmatpush1.bf16.msra.mxu0 %v373
    %437 = vmatprep.subr.bf16.mxu0 0
    %438 = vmatpush1.bf16.msra.mxu0 %v374
    %439 = vmatprep.subr.bf16.mxu0 0
    %440 = vmatpush1.bf16.msra.mxu0 %v375
    %441 = vmatprep.subr.bf16.mxu0 0
    %442 = vmatpush1.bf16.msra.mxu0 %v376
    %443 = vmatprep.subr.bf16.mxu0 0
    %444 = vmatpush1.bf16.msra.mxu0 %v377
    %445 = vmatprep.subr.bf16.mxu0 0
    %446 = vmatpush1.bf16.msra.mxu0 %v378
    %447 = vmatprep.subr.bf16.mxu0 0
    %448 = vmatpush1.bf16.msra.mxu0 0
    %449 = vmatprep.subr.bf16.mxu0 0
    %450 = vmatpush1.bf16.msra.mxu0 0
    %451 = vmatprep.subr.bf16.mxu0 0
    %452 = vmatpush1.bf16.msra.mxu0 0
    %453 = vmatprep.subr.bf16.mxu0 0
    %454 = vmatpush1.bf16.msra.mxu0 0
    %455 = vmatprep.subr.bf16.mxu0 0
    %456 = vmatpush1.bf16.msra.mxu0 0
    %457 = vmatprep.subr.bf16.mxu0 0
    %458 = vmatpush1.bf16.msra.mxu0 0
    %459 = vmatprep.subr.bf16.mxu0 0
    %460 = vmatpush1.bf16.msra.mxu0 0
    %461 = vmatprep.subr.bf16.mxu0 0
    %462 = vmatpush1.bf16.msra.mxu0 0
    %463 = vmatprep.mubr.bf16.mxu0 0
    %464 = vmatmul.mubr.bf16.gmra.mrb[0].mxu0 %v415
    %v465 = vpop.f32.mrb[0].mxu0
    %v466 = vadd.f32 %v382, %v465
    %v467 = vpop.f32.mrb[0].mxu0
    %v468 = vpop.f32.mrb[0].mxu0
    %v469 = vadd.f32 %v382, %v468
    %v470 = vpop.f32.mrb[0].mxu0
    %471 = vmatprep.mubr.bf16.mxu0 0
    %472 = vmatmul.mubr.bf16.gmra.mrb[0].mxu0 %v416
    %v473 = vpop.f32.mrb[0].mxu0
    %v474 = vadd.f32 %v382, %v473
    %v475 = vpop.f32.mrb[0].mxu0
    %v476 = vpop.f32.mrb[0].mxu0
    %v477 = vadd.f32 %v382, %v476
    %v478 = vpop.f32.mrb[0].mxu0
    %479 = vmatprep.mubr.bf16.mxu0 0
    %480 = vmatmul.mubr.bf16.gmra.mrb[0].mxu0 %v417
    %v481 = vpop.f32.mrb[0].mxu0
    %v482 = vadd.f32 %v382, %v481
    %v483 = vpop.f32.mrb[0].mxu0
    %v484 = vpop.f32.mrb[0].mxu0
    %v485 = vadd.f32 %v382, %v484
    %v486 = vpop.f32.mrb[0].mxu0
    %487 = vmatprep.mubr.bf16.mxu0 0
    %488 = vmatmul.mubr.bf16.gmra.mrb[0].mxu0 %v418
    %v489 = vpop.f32.mrb[0].mxu0
    %v490 = vadd.f32 %v382, %v489
    %v491 = vpop.f32.mrb[0].mxu0
    %v492 = vpop.f32.mrb[0].mxu0
    %v493 = vadd.f32 %v382, %v492
    %v494 = vpop.f32.mrb[0].mxu0
    %495 = vmatprep.mubr.bf16.mxu0 0
    %496 = vmatmul.mubr.bf16.gmra.mrb[0].mxu0 %v419
    %v497 = vpop.f32.mrb[0].mxu0
    %v498 = vadd.f32 %v382, %v497
    %v499 = vpop.f32.mrb[0].mxu0
    %v500 = vpop.f32.mrb[0].mxu0
    %v501 = vadd.f32 %v382, %v500
    %v502 = vpop.f32.mrb[0].mxu0
    %503 = vmatprep.mubr.bf16.mxu0 0
    %504 = vmatmul.mubr.bf16.gmra.mrb[0].mxu0 %v420
    %v505 = vpop.f32.mrb[0].mxu0
    %v506 = vadd.f32 %v382, %v505
    %v507 = vpop.f32.mrb[0].mxu0
    %v508 = vpop.f32.mrb[0].mxu0
    %v509 = vadd.f32 %v382, %v508
    %v510 = vpop.f32.mrb[0].mxu0
    %511 = vmatprep.mubr.bf16.mxu0 0
    %512 = vmatmul.mubr.bf16.gmra.mrb[0].mxu0 %v421
    %v513 = vpop.f32.mrb[0].mxu0
    %v514 = vadd.f32 %v382, %v513
    %v515 = vpop.f32.mrb[0].mxu0
    %v516 = vpop.f32.mrb[0].mxu0
    %v517 = vadd.f32 %v382, %v516
    %v518 = vpop.f32.mrb[0].mxu0
    %519 = vmatprep.mubr.bf16.mxu0 0
    %520 = vmatmul.mubr.bf16.gmra.mrb[0].mxu0 %v422
    %v521 = vpop.f32.mrb[0].mxu0
    %v522 = vadd.f32 %v382, %v521
    %v523 = vpop.f32.mrb[0].mxu0
    %v524 = vpop.f32.mrb[0].mxu0
    %v525 = vadd.f32 %v382, %v524
    %v526 = vpop.f32.mrb[0].mxu0
    %527 = vdwg.mxu0
    %v528 = vtanh.pop %v466
    %v529 = vtanh.pop %v469
    %v530 = vtanh.pop %v474
    %v531 = vtanh.pop %v477
    %v532 = vtanh.pop %v482
    %v533 = vtanh.pop %v485
    %v534 = vtanh.pop %v490
    %v535 = vtanh.pop %v493
    %v536 = vtanh.pop %v498
    %v537 = vtanh.pop %v501
    %v538 = vtanh.pop %v506
    %v539 = vtanh.pop %v509
    %v540 = vtanh.pop %v514
    %v541 = vtanh.pop %v517
    %v542 = vtanh.pop %v522
    %v543 = vtanh.pop %v525
    %v544 = vsel %vm145, %v528, 0.0
    %v545 = vsel %vm146, %v529, 0.0
    %v546 = vsel %vm147, %v530, 0.0
    %v547 = vsel %vm148, %v531, 0.0
    %v548 = vsel %vm149, %v532, 0.0
    %v549 = vsel %vm150, %v533, 0.0
    %v550 = vsel %vm151, %v534, 0.0
    %v551 = vsel %vm152, %v535, 0.0
    %v552 = vsel %vm153, %v536, 0.0
    %v553 = vsel %vm154, %v537, 0.0
    %v554 = vsel %vm155, %v538, 0.0
    %v555 = vsel %vm156, %v539, 0.0
    %v556 = vsel %vm157, %v540, 0.0
    %v557 = vsel %vm158, %v541, 0.0
    %v558 = vsel %vm159, %v542, 0.0
    %v559 = vsel %vm160, %v543, 0.0
    %v560 = vpack.c.bf16 %v545, %v544
    %v561 = vpack.c.bf16 %v547, %v546
    %v562 = vpack.c.bf16 %v549, %v548
    %v563 = vpack.c.bf16 %v551, %v550
    %v564 = vpack.c.bf16 %v553, %v552
    %v565 = vpack.c.bf16 %v555, %v554
    %v566 = vpack.c.bf16 %v557, %v556
    %v567 = vpack.c.bf16 %v559, %v558
    %568 = vst [vmem:[#allocation2] sm:$0xff] %v560
    %569 = vst [vmem:[#allocation2 + $0x20] sm:$0xff] %v561
    %570 = vst [vmem:[#allocation2 + $0x40] sm:$0xff] %v562
    %571 = vst [vmem:[#allocation2 + $0x60] sm:$0xff] %v563
    %572 = vst [vmem:[#allocation2 + $0x80] sm:$0xff] %v564
    %573 = vst [vmem:[#allocation2 + $0xa0] sm:$0xff] %v565
    %574 = vst [vmem:[#allocation2 + $0xc0] sm:$0xff] %v566
    %575 = vst [vmem:[#allocation2 + $0xe0] sm:$0xff] %v567
    %s576 = scalar_lea.vmem [#allocation8], 64
    %v577 = vld [vmem:[%s576] sm:$0xf]
    %v578 = vld [vmem:[%s576 + $0x4] sm:$0xf]
    %v579 = vld [vmem:[%s576 + $0x8] sm:$0xf]
    %v580 = vld [vmem:[%s576 + $0xc] sm:$0xf]
    %v581 = vld [vmem:[%s576 + $0x10] sm:$0xf]
    %v582 = vld [vmem:[%s576 + $0x14] sm:$0xf]
    %v583 = vld [vmem:[%s576 + $0x18] sm:$0xf]
    %v584 = vld [vmem:[%s576 + $0x1c] sm:$0xf]
    %v585 = vld [vmem:[%s576 + $0x20] sm:$0xf]
    %v586 = vld [vmem:[%s576 + $0x24] sm:$0xf]
    %v587 = vld [vmem:[%s576 + $0x28] sm:$0xf]
    %v588 = vld [vmem:[%s576 + $0x2c] sm:$0xf]
    %v589 = vld [vmem:[%s576 + $0x30] sm:$0xf]
    %v590 = vld [vmem:[%s576 + $0x34] sm:$0xf]
    %v591 = vld [vmem:[%s576 + $0x38] sm:$0xf]
    %v592 = vld [vmem:[%s576 + $0x3c] sm:$0xf]
    %v593 = vld [vmem:[%s3 + $0x1] sm:$0x1]
    %v610 = vunpack.c.l.b16 %v577
    %v611 = vunpack.c.l.b16 %v578
    %v612 = vunpack.c.l.b16 %v579
    %v613 = vunpack.c.l.b16 %v580
    %v614 = vunpack.c.l.b16 %v581
    %v615 = vunpack.c.l.b16 %v582
    %v616 = vunpack.c.l.b16 %v583
    %v617 = vunpack.c.l.b16 %v584
    %v618 = vunpack.c.l.b16 %v585
    %v619 = vunpack.c.l.b16 %v586
    %v620 = vunpack.c.l.b16 %v587
    %v621 = vunpack.c.l.b16 %v588
    %v622 = vunpack.c.l.b16 %v589
    %v623 = vunpack.c.l.b16 %v590
    %v624 = vunpack.c.l.b16 %v591
    %v625 = vunpack.c.l.b16 %v592
    %v626 = vpack.c.b16 %v611, %v610
    %v627 = vpack.c.b16 %v613, %v612
    %v628 = vpack.c.b16 %v615, %v614
    %v629 = vpack.c.b16 %v617, %v616
    %v630 = vpack.c.b16 %v619, %v618
    %v631 = vpack.c.b16 %v621, %v620
    %v632 = vpack.c.b16 %v623, %v622
    %v633 = vpack.c.b16 %v625, %v624
    %642 = vmatprep.subr.bf16.mxu0 0
    %643 = vmatpush1.bf16.msra.mxu0 %v626
    %644 = vmatprep.subr.bf16.mxu0 0
    %645 = vmatpush1.bf16.msra.mxu0 %v627
    %646 = vmatprep.subr.bf16.mxu0 0
    %647 = vmatpush1.bf16.msra.mxu0 %v628
    %648 = vmatprep.subr.bf16.mxu0 0
    %649 = vmatpush1.bf16.msra.mxu0 %v629
    %650 = vmatprep.subr.bf16.mxu0 0
    %651 = vmatpush1.bf16.msra.mxu0 %v630
    %652 = vmatprep.subr.bf16.mxu0 0
    %653 = vmatpush1.bf16.msra.mxu0 %v631
    %654 = vmatprep.subr.bf16.mxu0 0
    %655 = vmatpush1.bf16.msra.mxu0 %v632
    %656 = vmatprep.subr.bf16.mxu0 0
    %657 = vmatpush1.bf16.msra.mxu0 %v633
    %658 = vmatprep.subr.bf16.mxu0 0
    %659 = vmatpush1.bf16.msra.mxu0 0
    %660 = vmatprep.subr.bf16.mxu0 0
    %661 = vmatpush1.bf16.msra.mxu0 0
    %662 = vmatprep.subr.bf16.mxu0 0
    %663 = vmatpush1.bf16.msra.mxu0 0
    %664 = vmatprep.subr.bf16.mxu0 0
    %665 = vmatpush1.bf16.msra.mxu0 0
    %666 = vmatprep.subr.bf16.mxu0 0
    %667 = vmatpush1.bf16.msra.mxu0 0
    %668 = vmatprep.subr.bf16.mxu0 0
    %669 = vmatpush1.bf16.msra.mxu0 0
    %670 = vmatprep.subr.bf16.mxu0 0
    %671 = vmatpush1.bf16.msra.mxu0 0
    %672 = vmatprep.subr.bf16.mxu0 0
    %673 = vmatpush1.bf16.msra.mxu0 0
    %674 = vmatprep.mubr.bf16.mxu0 0
    %675 = vmatmul.mubr.bf16.gmra.mrb[0].mxu0 %v560
    %v676 = vpop.f32.mrb[0].mxu0
    %v677 = vadd.f32 0.0, %v676
    %v678 = vpop.f32.mrb[0].mxu0
    %v679 = vpop.f32.mrb[0].mxu0
    %v680 = vadd.f32 0.0, %v679
    %v681 = vpop.f32.mrb[0].mxu0
    %682 = vmatprep.mubr.bf16.mxu0 0
    %683 = vmatmul.mubr.bf16.gmra.mrb[0].mxu0 %v561
    %v684 = vpop.f32.mrb[0].mxu0
    %v685 = vadd.f32 0.0, %v684
    %v686 = vpop.f32.mrb[0].mxu0
    %v687 = vpop.f32.mrb[0].mxu0
    %v688 = vadd.f32 0.0, %v687
    %v689 = vpop.f32.mrb[0].mxu0
    %690 = vmatprep.mubr.bf16.mxu0 0
    %691 = vmatmul.mubr.bf16.gmra.mrb[0].mxu0 %v562
    %v692 = vpop.f32.mrb[0].mxu0
    %v693 = vadd.f32 0.0, %v692
    %v694 = vpop.f32.mrb[0].mxu0
    %v695 = vpop.f32.mrb[0].mxu0
    %v696 = vadd.f32 0.0, %v695
    %v697 = vpop.f32.mrb[0].mxu0
    %698 = vmatprep.mubr.bf16.mxu0 0
    %699 = vmatmul.mubr.bf16.gmra.mrb[0].mxu0 %v563
    %v700 = vpop.f32.mrb[0].mxu0
    %v701 = vadd.f32 0.0, %v700
    %v702 = vpop.f32.mrb[0].mxu0
    %v703 = vpop.f32.mrb[0].mxu0
    %v704 = vadd.f32 0.0, %v703
    %v705 = vpop.f32.mrb[0].mxu0
    %706 = vmatprep.mubr.bf16.mxu0 0
    %707 = vmatmul.mubr.bf16.gmra.mrb[0].mxu0 %v564
    %v708 = vpop.f32.mrb[0].mxu0
    %v709 = vadd.f32 0.0, %v708
    %v710 = vpop.f32.mrb[0].mxu0
    %v711 = vpop.f32.mrb[0].mxu0
    %v712 = vadd.f32 0.0, %v711
    %v713 = vpop.f32.mrb[0].mxu0
    %714 = vmatprep.mubr.bf16.mxu0 0
    %715 = vmatmul.mubr.bf16.gmra.mrb[0].mxu0 %v565
    %v716 = vpop.f32.mrb[0].mxu0
    %v717 = vadd.f32 0.0, %v716
    %v718 = vpop.f32.mrb[0].mxu0
    %v719 = vpop.f32.mrb[0].mxu0
    %v720 = vadd.f32 0.0, %v719
    %v721 = vpop.f32.mrb[0].mxu0
    %722 = vmatprep.mubr.bf16.mxu0 0
    %723 = vmatmul.mubr.bf16.gmra.mrb[0].mxu0 %v566
    %v724 = vpop.f32.mrb[0].mxu0
    %v725 = vadd.f32 0.0, %v724
    %v726 = vpop.f32.mrb[0].mxu0
    %v727 = vpop.f32.mrb[0].mxu0
    %v728 = vadd.f32 0.0, %v727
    %v729 = vpop.f32.mrb[0].mxu0
    %730 = vmatprep.mubr.bf16.mxu0 0
    %731 = vmatmul.mubr.bf16.gmra.mrb[0].mxu0 %v567
    %v732 = vpop.f32.mrb[0].mxu0
    %v733 = vadd.f32 0.0, %v732
    %v734 = vpop.f32.mrb[0].mxu0
    %v735 = vpop.f32.mrb[0].mxu0
    %v736 = vadd.f32 0.0, %v735
    %v737 = vpop.f32.mrb[0].mxu0
    %738 = vdwg.mxu0
    %v739 = vpack.c.bf16 %v680, %v677
    %v740 = vpack.c.bf16 %v688, %v685
    %v741 = vpack.c.bf16 %v696, %v693
    %v742 = vpack.c.bf16 %v704, %v701
    %v743 = vpack.c.bf16 %v712, %v709
    %v744 = vpack.c.bf16 %v720, %v717
    %v745 = vpack.c.bf16 %v728, %v725
    %v746 = vpack.c.bf16 %v736, %v733
    %v747 = vlaneseq
    %v748 = vshrl.u32 %v747, 7
    %v749 = vsub.s32 0, %v748
    %v750 = vrot.slane %v593, %v749
    %751 = vmatprep.subr.bf16.mxu0 0
    %752 = vmatpush1.bf16.msra.mxu0 %v739
    %753 = vmatprep.subr.bf16.mxu0 0
    %754 = vmatpush1.bf16.msra.mxu0 %v740
    %755 = vmatprep.subr.bf16.mxu0 0
    %756 = vmatpush1.bf16.msra.mxu0 %v741
    %757 = vmatprep.subr.bf16.mxu0 0
    %758 = vmatpush1.bf16.msra.mxu0 %v742
    %759 = vmatprep.subr.bf16.mxu0 0
    %760 = vmatpush1.bf16.msra.mxu0 %v743
    %761 = vmatprep.subr.bf16.mxu0 0
    %762 = vmatpush1.bf16.msra.mxu0 %v744
    %763 = vmatprep.subr.bf16.mxu0 0
    %764 = vmatpush1.bf16.msra.mxu0 %v745
    %765 = vmatprep.subr.bf16.mxu0 0
    %766 = vmatpush1.bf16.msra.mxu0 %v746
    %767 = vmatprep.subr.bf16.mxu0 0
    %768 = vmatpush1.bf16.msra.mxu0 0
    %769 = vmatprep.subr.bf16.mxu0 0
    %770 = vmatpush1.bf16.msra.mxu0 0
    %771 = vmatprep.subr.bf16.mxu0 0
    %772 = vmatpush1.bf16.msra.mxu0 0
    %773 = vmatprep.subr.bf16.mxu0 0
    %774 = vmatpush1.bf16.msra.mxu0 0
    %775 = vmatprep.subr.bf16.mxu0 0
    %776 = vmatpush1.bf16.msra.mxu0 0
    %777 = vmatprep.subr.bf16.mxu0 0
    %778 = vmatpush1.bf16.msra.mxu0 0
    %779 = vmatprep.subr.bf16.mxu0 0
    %780 = vmatpush1.bf16.msra.mxu0 0
    %781 = vmatprep.subr.bf16.mxu0 0
    %782 = vmatpush1.bf16.msra.mxu0 0
    %783 = vmatprep.mubr.bf16.mxu0 0
    %784 = vmatmul.mubr.bf16.gmra.mrb[0].mxu0 %v415
    %v785 = vpop.f32.mrb[0].mxu0
    %v786 = vadd.f32 %v750, %v785
    %v787 = vpop.f32.mrb[0].mxu0
    %v788 = vpop.f32.mrb[0].mxu0
    %v789 = vadd.f32 %v750, %v788
    %v790 = vpop.f32.mrb[0].mxu0
    %791 = vmatprep.mubr.bf16.mxu0 0
    %792 = vmatmul.mubr.bf16.gmra.mrb[0].mxu0 %v416
    %v793 = vpop.f32.mrb[0].mxu0
    %v794 = vadd.f32 %v750, %v793
    %v795 = vpop.f32.mrb[0].mxu0
    %v796 = vpop.f32.mrb[0].mxu0
    %v797 = vadd.f32 %v750, %v796
    %v798 = vpop.f32.mrb[0].mxu0
    %799 = vmatprep.mubr.bf16.mxu0 0
    %800 = vmatmul.mubr.bf16.gmra.mrb[0].mxu0 %v417
    %v801 = vpop.f32.mrb[0].mxu0
    %v802 = vadd.f32 %v750, %v801
    %v803 = vpop.f32.mrb[0].mxu0
    %v804 = vpop.f32.mrb[0].mxu0
    %v805 = vadd.f32 %v750, %v804
    %v806 = vpop.f32.mrb[0].mxu0
    %807 = vmatprep.mubr.bf16.mxu0 0
    %808 = vmatmul.mubr.bf16.gmra.mrb[0].mxu0 %v418
    %v809 = vpop.f32.mrb[0].mxu0
    %v810 = vadd.f32 %v750, %v809
    %v811 = vpop.f32.mrb[0].mxu0
    %v812 = vpop.f32.mrb[0].mxu0
    %v813 = vadd.f32 %v750, %v812
    %v814 = vpop.f32.mrb[0].mxu0
    %815 = vmatprep.mubr.bf16.mxu0 0
    %816 = vmatmul.mubr.bf16.gmra.mrb[0].mxu0 %v419
    %v817 = vpop.f32.mrb[0].mxu0
    %v818 = vadd.f32 %v750, %v817
    %v819 = vpop.f32.mrb[0].mxu0
    %v820 = vpop.f32.mrb[0].mxu0
    %v821 = vadd.f32 %v750, %v820
    %v822 = vpop.f32.mrb[0].mxu0
    %823 = vmatprep.mubr.bf16.mxu0 0
    %824 = vmatmul.mubr.bf16.gmra.mrb[0].mxu0 %v420
    %v825 = vpop.f32.mrb[0].mxu0
    %v826 = vadd.f32 %v750, %v825
    %v827 = vpop.f32.mrb[0].mxu0
    %v828 = vpop.f32.mrb[0].mxu0
    %v829 = vadd.f32 %v750, %v828
    %v830 = vpop.f32.mrb[0].mxu0
    %831 = vmatprep.mubr.bf16.mxu0 0
    %832 = vmatmul.mubr.bf16.gmra.mrb[0].mxu0 %v421
    %v833 = vpop.f32.mrb[0].mxu0
    %v834 = vadd.f32 %v750, %v833
    %v835 = vpop.f32.mrb[0].mxu0
    %v836 = vpop.f32.mrb[0].mxu0
    %v837 = vadd.f32 %v750, %v836
    %v838 = vpop.f32.mrb[0].mxu0
    %839 = vmatprep.mubr.bf16.mxu0 0
    %840 = vmatmul.mubr.bf16.gmra.mrb[0].mxu0 %v422
    %v841 = vpop.f32.mrb[0].mxu0
    %v842 = vadd.f32 %v750, %v841
    %v843 = vpop.f32.mrb[0].mxu0
    %v844 = vpop.f32.mrb[0].mxu0
    %v845 = vadd.f32 %v750, %v844
    %v846 = vpop.f32.mrb[0].mxu0
    %847 = vdwg.mxu0
    %v848 = vtanh.pop %v786
    %v849 = vtanh.pop %v789
    %v850 = vtanh.pop %v794
    %v851 = vtanh.pop %v797
    %v852 = vtanh.pop %v802
    %v853 = vtanh.pop %v805
    %v854 = vtanh.pop %v810
    %v855 = vtanh.pop %v813
    %v856 = vtanh.pop %v818
    %v857 = vtanh.pop %v821
    %v858 = vtanh.pop %v826
    %v859 = vtanh.pop %v829
    %v860 = vtanh.pop %v834
    %v861 = vtanh.pop %v837
    %v862 = vtanh.pop %v842
    %v863 = vtanh.pop %v845
    %v864 = vsel %vm145, %v848, 0.0
    %v865 = vsel %vm146, %v849, 0.0
    %v866 = vsel %vm147, %v850, 0.0
    %v867 = vsel %vm148, %v851, 0.0
    %v868 = vsel %vm149, %v852, 0.0
    %v869 = vsel %vm150, %v853, 0.0
    %v870 = vsel %vm151, %v854, 0.0
    %v871 = vsel %vm152, %v855, 0.0
    %v872 = vsel %vm153, %v856, 0.0
    %v873 = vsel %vm154, %v857, 0.0
    %v874 = vsel %vm155, %v858, 0.0
    %v875 = vsel %vm156, %v859, 0.0
    %v876 = vsel %vm157, %v860, 0.0
    %v877 = vsel %vm158, %v861, 0.0
    %v878 = vsel %vm159, %v862, 0.0
    %v879 = vsel %vm160, %v863, 0.0
    %v880 = vpack.c.bf16 %v865, %v864
    %v881 = vpack.c.bf16 %v867, %v866
    %v882 = vpack.c.bf16 %v869, %v868
    %v883 = vpack.c.bf16 %v871, %v870
    %v884 = vpack.c.bf16 %v873, %v872
    %v885 = vpack.c.bf16 %v875, %v874
    %v886 = vpack.c.bf16 %v877, %v876
    %v887 = vpack.c.bf16 %v879, %v878
    %888 = vst [vmem:[#allocation2 + $0x8] sm:$0xff] %v880
    %889 = vst [vmem:[#allocation2 + $0x28] sm:$0xff] %v881
    %890 = vst [vmem:[#allocation2 + $0x48] sm:$0xff] %v882
    %891 = vst [vmem:[#allocation2 + $0x68] sm:$0xff] %v883
    %892 = vst [vmem:[#allocation2 + $0x88] sm:$0xff] %v884
    %893 = vst [vmem:[#allocation2 + $0xa8] sm:$0xff] %v885
    %894 = vst [vmem:[#allocation2 + $0xc8] sm:$0xff] %v886
    %895 = vst [vmem:[#allocation2 + $0xe8] sm:$0xff] %v887
    %s896 = scalar_lea.vmem [#allocation8], 128
    %v897 = vld [vmem:[%s896] sm:$0xf]
    %v898 = vld [vmem:[%s896 + $0x4] sm:$0xf]
    %v899 = vld [vmem:[%s896 + $0x8] sm:$0xf]
    %v900 = vld [vmem:[%s896 + $0xc] sm:$0xf]
    %v901 = vld [vmem:[%s896 + $0x10] sm:$0xf]
    %v902 = vld [vmem:[%s896 + $0x14] sm:$0xf]
    %v903 = vld [vmem:[%s896 + $0x18] sm:$0xf]
    %v904 = vld [vmem:[%s896 + $0x1c] sm:$0xf]
    %v905 = vld [vmem:[%s896 + $0x20] sm:$0xf]
    %v906 = vld [vmem:[%s896 + $0x24] sm:$0xf]
    %v907 = vld [vmem:[%s896 + $0x28] sm:$0xf]
    %v908 = vld [vmem:[%s896 + $0x2c] sm:$0xf]
    %v909 = vld [vmem:[%s896 + $0x30] sm:$0xf]
    %v910 = vld [vmem:[%s896 + $0x34] sm:$0xf]
    %v911 = vld [vmem:[%s896 + $0x38] sm:$0xf]
    %v912 = vld [vmem:[%s896 + $0x3c] sm:$0xf]
    %v913 = vld [vmem:[%s3 + $0x2] sm:$0x1]
    %v930 = vunpack.c.l.b16 %v897
    %v931 = vunpack.c.l.b16 %v898
    %v932 = vunpack.c.l.b16 %v899
    %v933 = vunpack.c.l.b16 %v900
    %v934 = vunpack.c.l.b16 %v901
    %v935 = vunpack.c.l.b16 %v902
    %v936 = vunpack.c.l.b16 %v903
    %v937 = vunpack.c.l.b16 %v904
    %v938 = vunpack.c.l.b16 %v905
    %v939 = vunpack.c.l.b16 %v906
    %v940 = vunpack.c.l.b16 %v907
    %v941 = vunpack.c.l.b16 %v908
    %v942 = vunpack.c.l.b16 %v909
    %v943 = vunpack.c.l.b16 %v910
    %v944 = vunpack.c.l.b16 %v911
    %v945 = vunpack.c.l.b16 %v912
    %v946 = vpack.c.b16 %v931, %v930
    %v947 = vpack.c.b16 %v933, %v932
    %v948 = vpack.c.b16 %v935, %v934
    %v949 = vpack.c.b16 %v937, %v936
    %v950 = vpack.c.b16 %v939, %v938
    %v951 = vpack.c.b16 %v941, %v940
    %v952 = vpack.c.b16 %v943, %v942
    %v953 = vpack.c.b16 %v945, %v944
    %962 = vmatprep.subr.bf16.mxu0 0
    %963 = vmatpush1.bf16.msra.mxu0 %v946
    %964 = vmatprep.subr.bf16.mxu0 0
    %965 = vmatpush1.bf16.msra.mxu0 %v947
    %966 = vmatprep.subr.bf16.mxu0 0
    %967 = vmatpush1.bf16.msra.mxu0 %v948
    %968 = vmatprep.subr.bf16.mxu0 0
    %969 = vmatpush1.bf16.msra.mxu0 %v949
    %970 = vmatprep.subr.bf16.mxu0 0
    %971 = vmatpush1.bf16.msra.mxu0 %v950
    %972 = vmatprep.subr.bf16.mxu0 0
    %973 = vmatpush1.bf16.msra.mxu0 %v951
    %974 = vmatprep.subr.bf16.mxu0 0
    %975 = vmatpush1.bf16.msra.mxu0 %v952
    %976 = vmatprep.subr.bf16.mxu0 0
    %977 = vmatpush1.bf16.msra.mxu0 %v953
    %978 = vmatprep.subr.bf16.mxu0 0
    %979 = vmatpush1.bf16.msra.mxu0 0
    %980 = vmatprep.subr.bf16.mxu0 0
    %981 = vmatpush1.bf16.msra.mxu0 0
    %982 = vmatprep.subr.bf16.mxu0 0
    %983 = vmatpush1.bf16.msra.mxu0 0
    %984 = vmatprep.subr.bf16.mxu0 0
    %985 = vmatpush1.bf16.msra.mxu0 0
    %986 = vmatprep.subr.bf16.mxu0 0
    %987 = vmatpush1.bf16.msra.mxu0 0
    %988 = vmatprep.subr.bf16.mxu0 0
    %989 = vmatpush1.bf16.msra.mxu0 0
    %990 = vmatprep.subr.bf16.mxu0 0
    %991 = vmatpush1.bf16.msra.mxu0 0
    %992 = vmatprep.subr.bf16.mxu0 0
    %993 = vmatpush1.bf16.msra.mxu0 0
    %994 = vmatprep.mubr.bf16.mxu0 0
    %995 = vmatmul.mubr.bf16.gmra.mrb[0].mxu0 %v880
    %v996 = vpop.f32.mrb[0].mxu0
    %v997 = vadd.f32 0.0, %v996
    %v998 = vpop.f32.mrb[0].mxu0
    %v999 = vpop.f32.mrb[0].mxu0
    %v1000 = vadd.f32 0.0, %v999
    %v1001 = vpop.f32.mrb[0].mxu0
    %1002 = vmatprep.mubr.bf16.mxu0 0
    %1003 = vmatmul.mubr.bf16.gmra.mrb[0].mxu0 %v881
    %v1004 = vpop.f32.mrb[0].mxu0
    %v1005 = vadd.f32 0.0, %v1004
    %v1006 = vpop.f32.mrb[0].mxu0
    %v1007 = vpop.f32.mrb[0].mxu0
    %v1008 = vadd.f32 0.0, %v1007
    %v1009 = vpop.f32.mrb[0].mxu0
    %1010 = vmatprep.mubr.bf16.mxu0 0
    %1011 = vmatmul.mubr.bf16.gmra.mrb[0].mxu0 %v882
    %v1012 = vpop.f32.mrb[0].mxu0
    %v1013 = vadd.f32 0.0, %v1012
    %v1014 = vpop.f32.mrb[0].mxu0
    %v1015 = vpop.f32.mrb[0].mxu0
    %v1016 = vadd.f32 0.0, %v1015
    %v1017 = vpop.f32.mrb[0].mxu0
    %1018 = vmatprep.mubr.bf16.mxu0 0
    %1019 = vmatmul.mubr.bf16.gmra.mrb[0].mxu0 %v883
    %v1020 = vpop.f32.mrb[0].mxu0
    %v1021 = vadd.f32 0.0, %v1020
    %v1022 = vpop.f32.mrb[0].mxu0
    %v1023 = vpop.f32.mrb[0].mxu0
    %v1024 = vadd.f32 0.0, %v1023
    %v1025 = vpop.f32.mrb[0].mxu0
    %1026 = vmatprep.mubr.bf16.mxu0 0
    %1027 = vmatmul.mubr.bf16.gmra.mrb[0].mxu0 %v884
    %v1028 = vpop.f32.mrb[0].mxu0
    %v1029 = vadd.f32 0.0, %v1028
    %v1030 = vpop.f32.mrb[0].mxu0
    %v1031 = vpop.f32.mrb[0].mxu0
    %v1032 = vadd.f32 0.0, %v1031
    %v1033 = vpop.f32.mrb[0].mxu0
    %1034 = vmatprep.mubr.bf16.mxu0 0
    %1035 = vmatmul.mubr.bf16.gmra.mrb[0].mxu0 %v885
    %v1036 = vpop.f32.mrb[0].mxu0
    %v1037 = vadd.f32 0.0, %v1036
    %v1038 = vpop.f32.mrb[0].mxu0
    %v1039 = vpop.f32.mrb[0].mxu0
    %v1040 = vadd.f32 0.0, %v1039
    %v1041 = vpop.f32.mrb[0].mxu0
    %1042 = vmatprep.mubr.bf16.mxu0 0
    %1043 = vmatmul.mubr.bf16.gmra.mrb[0].mxu0 %v886
    %v1044 = vpop.f32.mrb[0].mxu0
    %v1045 = vadd.f32 0.0, %v1044
    %v1046 = vpop.f32.mrb[0].mxu0
    %v1047 = vpop.f32.mrb[0].mxu0
    %v1048 = vadd.f32 0.0, %v1047
    %v1049 = vpop.f32.mrb[0].mxu0
    %1050 = vmatprep.mubr.bf16.mxu0 0
    %1051 = vmatmul.mubr.bf16.gmra.mrb[0].mxu0 %v887
    %v1052 = vpop.f32.mrb[0].mxu0
    %v1053 = vadd.f32 0.0, %v1052
    %v1054 = vpop.f32.mrb[0].mxu0
    %v1055 = vpop.f32.mrb[0].mxu0
    %v1056 = vadd.f32 0.0, %v1055
    %v1057 = vpop.f32.mrb[0].mxu0
    %1058 = vdwg.mxu0
    %v1059 = vpack.c.bf16 %v1000, %v997
    %v1060 = vpack.c.bf16 %v1008, %v1005
    %v1061 = vpack.c.bf16 %v1016, %v1013
    %v1062 = vpack.c.bf16 %v1024, %v1021
    %v1063 = vpack.c.bf16 %v1032, %v1029
    %v1064 = vpack.c.bf16 %v1040, %v1037
    %v1065 = vpack.c.bf16 %v1048, %v1045
    %v1066 = vpack.c.bf16 %v1056, %v1053
    %v1067 = vlaneseq
    %v1068 = vshrl.u32 %v1067, 7
    %v1069 = vsub.s32 0, %v1068
    %v1070 = vrot.slane %v913, %v1069
    %1071 = vmatprep.subr.bf16.mxu0 0
    %1072 = vmatpush1.bf16.msra.mxu0 %v1059
    %1073 = vmatprep.subr.bf16.mxu0 0
    %1074 = vmatpush1.bf16.msra.mxu0 %v1060
    %1075 = vmatprep.subr.bf16.mxu0 0
    %1076 = vmatpush1.bf16.msra.mxu0 %v1061
    %1077 = vmatprep.subr.bf16.mxu0 0
    %1078 = vmatpush1.bf16.msra.mxu0 %v1062
    %1079 = vmatprep.subr.bf16.mxu0 0
    %1080 = vmatpush1.bf16.msra.mxu0 %v1063
    %1081 = vmatprep.subr.bf16.mxu0 0
    %1082 = vmatpush1.bf16.msra.mxu0 %v1064
    %1083 = vmatprep.subr.bf16.mxu0 0
    %1084 = vmatpush1.bf16.msra.mxu0 %v1065
    %1085 = vmatprep.subr.bf16.mxu0 0
    %1086 = vmatpush1.bf16.msra.mxu0 %v1066
    %1087 = vmatprep.subr.bf16.mxu0 0
    %1088 = vmatpush1.bf16.msra.mxu0 0
    %1089 = vmatprep.subr.bf16.mxu0 0
    %1090 = vmatpush1.bf16.msra.mxu0 0
    %1091 = vmatprep.subr.bf16.mxu0 0
    %1092 = vmatpush1.bf16.msra.mxu0 0
    %1093 = vmatprep.subr.bf16.mxu0 0
    %1094 = vmatpush1.bf16.msra.mxu0 0
    %1095 = vmatprep.subr.bf16.mxu0 0
    %1096 = vmatpush1.bf16.msra.mxu0 0
    %1097 = vmatprep.subr.bf16.mxu0 0
    %1098 = vmatpush1.bf16.msra.mxu0 0
    %1099 = vmatprep.subr.bf16.mxu0 0
    %1100 = vmatpush1.bf16.msra.mxu0 0
    %1101 = vmatprep.subr.bf16.mxu0 0
    %1102 = vmatpush1.bf16.msra.mxu0 0
    %1103 = vmatprep.mubr.bf16.mxu0 0
    %1104 = vmatmul.mubr.bf16.gmra.mrb[0].mxu0 %v415
    %v1105 = vpop.f32.mrb[0].mxu0
    %v1106 = vadd.f32 %v1070, %v1105
    %v1107 = vpop.f32.mrb[0].mxu0
    %v1108 = vpop.f32.mrb[0].mxu0
    %v1109 = vadd.f32 %v1070, %v1108
    %v1110 = vpop.f32.mrb[0].mxu0
    %1111 = vmatprep.mubr.bf16.mxu0 0
    %1112 = vmatmul.mubr.bf16.gmra.mrb[0].mxu0 %v416
    %v1113 = vpop.f32.mrb[0].mxu0
    %v1114 = vadd.f32 %v1070, %v1113
    %v1115 = vpop.f32.mrb[0].mxu0
    %v1116 = vpop.f32.mrb[0].mxu0
    %v1117 = vadd.f32 %v1070, %v1116
    %v1118 = vpop.f32.mrb[0].mxu0
    %1119 = vmatprep.mubr.bf16.mxu0 0
    %1120 = vmatmul.mubr.bf16.gmra.mrb[0].mxu0 %v417
    %v1121 = vpop.f32.mrb[0].mxu0
    %v1122 = vadd.f32 %v1070, %v1121
    %v1123 = vpop.f32.mrb[0].mxu0
    %v1124 = vpop.f32.mrb[0].mxu0
    %v1125 = vadd.f32 %v1070, %v1124
    %v1126 = vpop.f32.mrb[0].mxu0
    %1127 = vmatprep.mubr.bf16.mxu0 0
    %1128 = vmatmul.mubr.bf16.gmra.mrb[0].mxu0 %v418
    %v1129 = vpop.f32.mrb[0].mxu0
    %v1130 = vadd.f32 %v1070, %v1129
    %v1131 = vpop.f32.mrb[0].mxu0
    %v1132 = vpop.f32.mrb[0].mxu0
    %v1133 = vadd.f32 %v1070, %v1132
    %v1134 = vpop.f32.mrb[0].mxu0
    %1135 = vmatprep.mubr.bf16.mxu0 0
    %1136 = vmatmul.mubr.bf16.gmra.mrb[0].mxu0 %v419
    %v1137 = vpop.f32.mrb[0].mxu0
    %v1138 = vadd.f32 %v1070, %v1137
    %v1139 = vpop.f32.mrb[0].mxu0
    %v1140 = vpop.f32.mrb[0].mxu0
    %v1141 = vadd.f32 %v1070, %v1140
    %v1142 = vpop.f32.mrb[0].mxu0
    %1143 = vmatprep.mubr.bf16.mxu0 0
    %1144 = vmatmul.mubr.bf16.gmra.mrb[0].mxu0 %v420
    %v1145 = vpop.f32.mrb[0].mxu0
    %v1146 = vadd.f32 %v1070, %v1145
    %v1147 = vpop.f32.mrb[0].mxu0
    %v1148 = vpop.f32.mrb[0].mxu0
    %v1149 = vadd.f32 %v1070, %v1148
    %v1150 = vpop.f32.mrb[0].mxu0
    %1151 = vmatprep.mubr.bf16.mxu0 0
    %1152 = vmatmul.mubr.bf16.gmra.mrb[0].mxu0 %v421
    %v1153 = vpop.f32.mrb[0].mxu0
    %v1154 = vadd.f32 %v1070, %v1153
    %v1155 = vpop.f32.mrb[0].mxu0
    %v1156 = vpop.f32.mrb[0].mxu0
    %v1157 = vadd.f32 %v1070, %v1156
    %v1158 = vpop.f32.mrb[0].mxu0
    %1159 = vmatprep.mubr.bf16.mxu0 0
    %1160 = vmatmul.mubr.bf16.gmra.mrb[0].mxu0 %v422
    %v1161 = vpop.f32.mrb[0].mxu0
    %v1162 = vadd.f32 %v1070, %v1161
    %v1163 = vpop.f32.mrb[0].mxu0
    %v1164 = vpop.f32.mrb[0].mxu0
    %v1165 = vadd.f32 %v1070, %v1164
    %v1166 = vpop.f32.mrb[0].mxu0
    %1167 = vdwg.mxu0
    %v1168 = vtanh.pop %v1106
    %v1169 = vtanh.pop %v1109
    %v1170 = vtanh.pop %v1114
    %v1171 = vtanh.pop %v1117
    %v1172 = vtanh.pop %v1122
    %v1173 = vtanh.pop %v1125
    %v1174 = vtanh.pop %v1130
    %v1175 = vtanh.pop %v1133
    %v1176 = vtanh.pop %v1138
    %v1177 = vtanh.pop %v1141
    %v1178 = vtanh.pop %v1146
    %v1179 = vtanh.pop %v1149
    %v1180 = vtanh.pop %v1154
    %v1181 = vtanh.pop %v1157
    %v1182 = vtanh.pop %v1162
    %v1183 = vtanh.pop %v1165
    %v1184 = vsel %vm145, %v1168, 0.0
    %v1185 = vsel %vm146, %v1169, 0.0
    %v1186 = vsel %vm147, %v1170, 0.0
    %v1187 = vsel %vm148, %v1171, 0.0
    %v1188 = vsel %vm149, %v1172, 0.0
    %v1189 = vsel %vm150, %v1173, 0.0
    %v1190 = vsel %vm151, %v1174, 0.0
    %v1191 = vsel %vm152, %v1175, 0.0
    %v1192 = vsel %vm153, %v1176, 0.0
    %v1193 = vsel %vm154, %v1177, 0.0
    %v1194 = vsel %vm155, %v1178, 0.0
    %v1195 = vsel %vm156, %v1179, 0.0
    %v1196 = vsel %vm157, %v1180, 0.0
    %v1197 = vsel %vm158, %v1181, 0.0
    %v1198 = vsel %vm159, %v1182, 0.0
    %v1199 = vsel %vm160, %v1183, 0.0
    %v1200 = vpack.c.bf16 %v1185, %v1184
    %v1201 = vpack.c.bf16 %v1187, %v1186
    %v1202 = vpack.c.bf16 %v1189, %v1188
    %v1203 = vpack.c.bf16 %v1191, %v1190
    %v1204 = vpack.c.bf16 %v1193, %v1192
    %v1205 = vpack.c.bf16 %v1195, %v1194
    %v1206 = vpack.c.bf16 %v1197, %v1196
    %v1207 = vpack.c.bf16 %v1199, %v1198
    %1208 = vst [vmem:[#allocation2 + $0x10] sm:$0xff] %v1200
    %1209 = vst [vmem:[#allocation2 + $0x30] sm:$0xff] %v1201
    %1210 = vst [vmem:[#allocation2 + $0x50] sm:$0xff] %v1202
    %1211 = vst [vmem:[#allocation2 + $0x70] sm:$0xff] %v1203
    %1212 = vst [vmem:[#allocation2 + $0x90] sm:$0xff] %v1204
    %1213 = vst [vmem:[#allocation2 + $0xb0] sm:$0xff] %v1205
    %1214 = vst [vmem:[#allocation2 + $0xd0] sm:$0xff] %v1206
    %1215 = vst [vmem:[#allocation2 + $0xf0] sm:$0xff] %v1207
    %s1216 = scalar_lea.vmem [#allocation8], 192
    %v1217 = vld [vmem:[%s1216] sm:$0xf]
    %v1218 = vld [vmem:[%s1216 + $0x4] sm:$0xf]
    %v1219 = vld [vmem:[%s1216 + $0x8] sm:$0xf]
    %v1220 = vld [vmem:[%s1216 + $0xc] sm:$0xf]
    %v1221 = vld [vmem:[%s1216 + $0x10] sm:$0xf]
    %v1222 = vld [vmem:[%s1216 + $0x14] sm:$0xf]
    %v1223 = vld [vmem:[%s1216 + $0x18] sm:$0xf]
    %v1224 = vld [vmem:[%s1216 + $0x1c] sm:$0xf]
    %v1225 = vld [vmem:[%s1216 + $0x20] sm:$0xf]
    %v1226 = vld [vmem:[%s1216 + $0x24] sm:$0xf]
    %v1227 = vld [vmem:[%s1216 + $0x28] sm:$0xf]
    %v1228 = vld [vmem:[%s1216 + $0x2c] sm:$0xf]
    %v1229 = vld [vmem:[%s1216 + $0x30] sm:$0xf]
    %v1230 = vld [vmem:[%s1216 + $0x34] sm:$0xf]
    %v1231 = vld [vmem:[%s1216 + $0x38] sm:$0xf]
    %v1232 = vld [vmem:[%s1216 + $0x3c] sm:$0xf]
    %v1233 = vld [vmem:[%s3 + $0x3] sm:$0x1]
    %v1250 = vunpack.c.l.b16 %v1217
    %v1251 = vunpack.c.l.b16 %v1218
    %v1252 = vunpack.c.l.b16 %v1219
    %v1253 = vunpack.c.l.b16 %v1220
    %v1254 = vunpack.c.l.b16 %v1221
    %v1255 = vunpack.c.l.b16 %v1222
    %v1256 = vunpack.c.l.b16 %v1223
    %v1257 = vunpack.c.l.b16 %v1224
    %v1258 = vunpack.c.l.b16 %v1225
    %v1259 = vunpack.c.l.b16 %v1226
    %v1260 = vunpack.c.l.b16 %v1227
    %v1261 = vunpack.c.l.b16 %v1228
    %v1262 = vunpack.c.l.b16 %v1229
    %v1263 = vunpack.c.l.b16 %v1230
    %v1264 = vunpack.c.l.b16 %v1231
    %v1265 = vunpack.c.l.b16 %v1232
    %v1266 = vpack.c.b16 %v1251, %v1250
    %v1267 = vpack.c.b16 %v1253, %v1252
    %v1268 = vpack.c.b16 %v1255, %v1254
    %v1269 = vpack.c.b16 %v1257, %v1256
    %v1270 = vpack.c.b16 %v1259, %v1258
    %v1271 = vpack.c.b16 %v1261, %v1260
    %v1272 = vpack.c.b16 %v1263, %v1262
    %v1273 = vpack.c.b16 %v1265, %v1264
    %1282 = vmatprep.subr.bf16.mxu0 0
    %1283 = vmatpush1.bf16.msra.mxu0 %v1266
    %1284 = vmatprep.subr.bf16.mxu0 0
    %1285 = vmatpush1.bf16.msra.mxu0 %v1267
    %1286 = vmatprep.subr.bf16.mxu0 0
    %1287 = vmatpush1.bf16.msra.mxu0 %v1268
    %1288 = vmatprep.subr.bf16.mxu0 0
    %1289 = vmatpush1.bf16.msra.mxu0 %v1269
    %1290 = vmatprep.subr.bf16.mxu0 0
    %1291 = vmatpush1.bf16.msra.mxu0 %v1270
    %1292 = vmatprep.subr.bf16.mxu0 0
    %1293 = vmatpush1.bf16.msra.mxu0 %v1271
    %1294 = vmatprep.subr.bf16.mxu0 0
    %1295 = vmatpush1.bf16.msra.mxu0 %v1272
    %1296 = vmatprep.subr.bf16.mxu0 0
    %1297 = vmatpush1.bf16.msra.mxu0 %v1273
    %1298 = vmatprep.subr.bf16.mxu0 0
    %1299 = vmatpush1.bf16.msra.mxu0 0
    %1300 = vmatprep.subr.bf16.mxu0 0
    %1301 = vmatpush1.bf16.msra.mxu0 0
    %1302 = vmatprep.subr.bf16.mxu0 0
    %1303 = vmatpush1.bf16.msra.mxu0 0
    %1304 = vmatprep.subr.bf16.mxu0 0
    %1305 = vmatpush1.bf16.msra.mxu0 0
    %1306 = vmatprep.subr.bf16.mxu0 0
    %1307 = vmatpush1.bf16.msra.mxu0 0
    %1308 = vmatprep.subr.bf16.mxu0 0
    %1309 = vmatpush1.bf16.msra.mxu0 0
    %1310 = vmatprep.subr.bf16.mxu0 0
    %1311 = vmatpush1.bf16.msra.mxu0 0
    %1312 = vmatprep.subr.bf16.mxu0 0
    %1313 = vmatpush1.bf16.msra.mxu0 0
    %1314 = vmatprep.mubr.bf16.mxu0 0
    %1315 = vmatmul.mubr.bf16.gmra.mrb[0].mxu0 %v1200
    %v1316 = vpop.f32.mrb[0].mxu0
    %v1317 = vadd.f32 0.0, %v1316
    %v1318 = vpop.f32.mrb[0].mxu0
    %v1319 = vpop.f32.mrb[0].mxu0
    %v1320 = vadd.f32 0.0, %v1319
    %v1321 = vpop.f32.mrb[0].mxu0
    %1322 = vmatprep.mubr.bf16.mxu0 0
    %1323 = vmatmul.mubr.bf16.gmra.mrb[0].mxu0 %v1201
    %v1324 = vpop.f32.mrb[0].mxu0
    %v1325 = vadd.f32 0.0, %v1324
    %v1326 = vpop.f32.mrb[0].mxu0
    %v1327 = vpop.f32.mrb[0].mxu0
    %v1328 = vadd.f32 0.0, %v1327
    %v1329 = vpop.f32.mrb[0].mxu0
    %1330 = vmatprep.mubr.bf16.mxu0 0
    %1331 = vmatmul.mubr.bf16.gmra.mrb[0].mxu0 %v1202
    %v1332 = vpop.f32.mrb[0].mxu0
    %v1333 = vadd.f32 0.0, %v1332
    %v1334 = vpop.f32.mrb[0].mxu0
    %v1335 = vpop.f32.mrb[0].mxu0
    %v1336 = vadd.f32 0.0, %v1335
    %v1337 = vpop.f32.mrb[0].mxu0
    %1338 = vmatprep.mubr.bf16.mxu0 0
    %1339 = vmatmul.mubr.bf16.gmra.mrb[0].mxu0 %v1203
    %v1340 = vpop.f32.mrb[0].mxu0
    %v1341 = vadd.f32 0.0, %v1340
    %v1342 = vpop.f32.mrb[0].mxu0
    %v1343 = vpop.f32.mrb[0].mxu0
    %v1344 = vadd.f32 0.0, %v1343
    %v1345 = vpop.f32.mrb[0].mxu0
    %1346 = vmatprep.mubr.bf16.mxu0 0
    %1347 = vmatmul.mubr.bf16.gmra.mrb[0].mxu0 %v1204
    %v1348 = vpop.f32.mrb[0].mxu0
    %v1349 = vadd.f32 0.0, %v1348
    %v1350 = vpop.f32.mrb[0].mxu0
    %v1351 = vpop.f32.mrb[0].mxu0
    %v1352 = vadd.f32 0.0, %v1351
    %v1353 = vpop.f32.mrb[0].mxu0
    %1354 = vmatprep.mubr.bf16.mxu0 0
    %1355 = vmatmul.mubr.bf16.gmra.mrb[0].mxu0 %v1205
    %v1356 = vpop.f32.mrb[0].mxu0
    %v1357 = vadd.f32 0.0, %v1356
    %v1358 = vpop.f32.mrb[0].mxu0
    %v1359 = vpop.f32.mrb[0].mxu0
    %v1360 = vadd.f32 0.0, %v1359
    %v1361 = vpop.f32.mrb[0].mxu0
    %1362 = vmatprep.mubr.bf16.mxu0 0
    %1363 = vmatmul.mubr.bf16.gmra.mrb[0].mxu0 %v1206
    %v1364 = vpop.f32.mrb[0].mxu0
    %v1365 = vadd.f32 0.0, %v1364
    %v1366 = vpop.f32.mrb[0].mxu0
    %v1367 = vpop.f32.mrb[0].mxu0
    %v1368 = vadd.f32 0.0, %v1367
    %v1369 = vpop.f32.mrb[0].mxu0
    %1370 = vmatprep.mubr.bf16.mxu0 0
    %1371 = vmatmul.mubr.bf16.gmra.mrb[0].mxu0 %v1207
    %v1372 = vpop.f32.mrb[0].mxu0
    %v1373 = vadd.f32 0.0, %v1372
    %v1374 = vpop.f32.mrb[0].mxu0
    %v1375 = vpop.f32.mrb[0].mxu0
    %v1376 = vadd.f32 0.0, %v1375
    %v1377 = vpop.f32.mrb[0].mxu0
    %1378 = vdwg.mxu0
    %v1379 = vpack.c.bf16 %v1320, %v1317
    %v1380 = vpack.c.bf16 %v1328, %v1325
    %v1381 = vpack.c.bf16 %v1336, %v1333
    %v1382 = vpack.c.bf16 %v1344, %v1341
    %v1383 = vpack.c.bf16 %v1352, %v1349
    %v1384 = vpack.c.bf16 %v1360, %v1357
    %v1385 = vpack.c.bf16 %v1368, %v1365
    %v1386 = vpack.c.bf16 %v1376, %v1373
    %v1387 = vlaneseq
    %v1388 = vshrl.u32 %v1387, 7
    %v1389 = vsub.s32 0, %v1388
    %v1390 = vrot.slane %v1233, %v1389
    %1391 = vmatprep.subr.bf16.mxu0 0
    %1392 = vmatpush1.bf16.msra.mxu0 %v1379
    %1393 = vmatprep.subr.bf16.mxu0 0
    %1394 = vmatpush1.bf16.msra.mxu0 %v1380
    %1395 = vmatprep.subr.bf16.mxu0 0
    %1396 = vmatpush1.bf16.msra.mxu0 %v1381
    %1397 = vmatprep.subr.bf16.mxu0 0
    %1398 = vmatpush1.bf16.msra.mxu0 %v1382
    %1399 = vmatprep.subr.bf16.mxu0 0
    %1400 = vmatpush1.bf16.msra.mxu0 %v1383
    %1401 = vmatprep.subr.bf16.mxu0 0
    %1402 = vmatpush1.bf16.msra.mxu0 %v1384
    %1403 = vmatprep.subr.bf16.mxu0 0
    %1404 = vmatpush1.bf16.msra.mxu0 %v1385
    %1405 = vmatprep.subr.bf16.mxu0 0
    %1406 = vmatpush1.bf16.msra.mxu0 %v1386
    %1407 = vmatprep.subr.bf16.mxu0 0
    %1408 = vmatpush1.bf16.msra.mxu0 0
    %1409 = vmatprep.subr.bf16.mxu0 0
    %1410 = vmatpush1.bf16.msra.mxu0 0
    %1411 = vmatprep.subr.bf16.mxu0 0
    %1412 = vmatpush1.bf16.msra.mxu0 0
    %1413 = vmatprep.subr.bf16.mxu0 0
    %1414 = vmatpush1.bf16.msra.mxu0 0
    %1415 = vmatprep.subr.bf16.mxu0 0
    %1416 = vmatpush1.bf16.msra.mxu0 0
    %1417 = vmatprep.subr.bf16.mxu0 0
    %1418 = vmatpush1.bf16.msra.mxu0 0
    %1419 = vmatprep.subr.bf16.mxu0 0
    %1420 = vmatpush1.bf16.msra.mxu0 0
    %1421 = vmatprep.subr.bf16.mxu0 0
    %1422 = vmatpush1.bf16.msra.mxu0 0
    %1423 = vmatprep.mubr.bf16.mxu0 0
    %1424 = vmatmul.mubr.bf16.gmra.mrb[0].mxu0 %v415
    %v1425 = vpop.f32.mrb[0].mxu0
    %v1426 = vadd.f32 %v1390, %v1425
    %v1427 = vpop.f32.mrb[0].mxu0
    %v1428 = vpop.f32.mrb[0].mxu0
    %v1429 = vadd.f32 %v1390, %v1428
    %v1430 = vpop.f32.mrb[0].mxu0
    %1431 = vmatprep.mubr.bf16.mxu0 0
    %1432 = vmatmul.mubr.bf16.gmra.mrb[0].mxu0 %v416
    %v1433 = vpop.f32.mrb[0].mxu0
    %v1434 = vadd.f32 %v1390, %v1433
    %v1435 = vpop.f32.mrb[0].mxu0
    %v1436 = vpop.f32.mrb[0].mxu0
    %v1437 = vadd.f32 %v1390, %v1436
    %v1438 = vpop.f32.mrb[0].mxu0
    %1439 = vmatprep.mubr.bf16.mxu0 0
    %1440 = vmatmul.mubr.bf16.gmra.mrb[0].mxu0 %v417
    %v1441 = vpop.f32.mrb[0].mxu0
    %v1442 = vadd.f32 %v1390, %v1441
    %v1443 = vpop.f32.mrb[0].mxu0
    %v1444 = vpop.f32.mrb[0].mxu0
    %v1445 = vadd.f32 %v1390, %v1444
    %v1446 = vpop.f32.mrb[0].mxu0
    %1447 = vmatprep.mubr.bf16.mxu0 0
    %1448 = vmatmul.mubr.bf16.gmra.mrb[0].mxu0 %v418
    %v1449 = vpop.f32.mrb[0].mxu0
    %v1450 = vadd.f32 %v1390, %v1449
    %v1451 = vpop.f32.mrb[0].mxu0
    %v1452 = vpop.f32.mrb[0].mxu0
    %v1453 = vadd.f32 %v1390, %v1452
    %v1454 = vpop.f32.mrb[0].mxu0
    %1455 = vmatprep.mubr.bf16.mxu0 0
    %1456 = vmatmul.mubr.bf16.gmra.mrb[0].mxu0 %v419
    %v1457 = vpop.f32.mrb[0].mxu0
    %v1458 = vadd.f32 %v1390, %v1457
    %v1459 = vpop.f32.mrb[0].mxu0
    %v1460 = vpop.f32.mrb[0].mxu0
    %v1461 = vadd.f32 %v1390, %v1460
    %v1462 = vpop.f32.mrb[0].mxu0
    %1463 = vmatprep.mubr.bf16.mxu0 0
    %1464 = vmatmul.mubr.bf16.gmra.mrb[0].mxu0 %v420
    %v1465 = vpop.f32.mrb[0].mxu0
    %v1466 = vadd.f32 %v1390, %v1465
    %v1467 = vpop.f32.mrb[0].mxu0
    %v1468 = vpop.f32.mrb[0].mxu0
    %v1469 = vadd.f32 %v1390, %v1468
    %v1470 = vpop.f32.mrb[0].mxu0
    %1471 = vmatprep.mubr.bf16.mxu0 0
    %1472 = vmatmul.mubr.bf16.gmra.mrb[0].mxu0 %v421
    %v1473 = vpop.f32.mrb[0].mxu0
    %v1474 = vadd.f32 %v1390, %v1473
    %v1475 = vpop.f32.mrb[0].mxu0
    %v1476 = vpop.f32.mrb[0].mxu0
    %v1477 = vadd.f32 %v1390, %v1476
    %v1478 = vpop.f32.mrb[0].mxu0
    %1479 = vmatprep.mubr.bf16.mxu0 0
    %1480 = vmatmul.mubr.bf16.gmra.mrb[0].mxu0 %v422
    %v1481 = vpop.f32.mrb[0].mxu0
    %v1482 = vadd.f32 %v1390, %v1481
    %v1483 = vpop.f32.mrb[0].mxu0
    %v1484 = vpop.f32.mrb[0].mxu0
    %v1485 = vadd.f32 %v1390, %v1484
    %v1486 = vpop.f32.mrb[0].mxu0
    %1487 = vdwg.mxu0
    %v1488 = vtanh.pop %v1426
    %v1489 = vtanh.pop %v1429
    %v1490 = vtanh.pop %v1434
    %v1491 = vtanh.pop %v1437
    %v1492 = vtanh.pop %v1442
    %v1493 = vtanh.pop %v1445
    %v1494 = vtanh.pop %v1450
    %v1495 = vtanh.pop %v1453
    %v1496 = vtanh.pop %v1458
    %v1497 = vtanh.pop %v1461
    %v1498 = vtanh.pop %v1466
    %v1499 = vtanh.pop %v1469
    %v1500 = vtanh.pop %v1474
    %v1501 = vtanh.pop %v1477
    %v1502 = vtanh.pop %v1482
    %v1503 = vtanh.pop %v1485
    %v1504 = vsel %vm145, %v1488, 0.0
    %v1505 = vsel %vm146, %v1489, 0.0
    %v1506 = vsel %vm147, %v1490, 0.0
    %v1507 = vsel %vm148, %v1491, 0.0
    %v1508 = vsel %vm149, %v1492, 0.0
    %v1509 = vsel %vm150, %v1493, 0.0
    %v1510 = vsel %vm151, %v1494, 0.0
    %v1511 = vsel %vm152, %v1495, 0.0
    %v1512 = vsel %vm153, %v1496, 0.0
    %v1513 = vsel %vm154, %v1497, 0.0
    %v1514 = vsel %vm155, %v1498, 0.0
    %v1515 = vsel %vm156, %v1499, 0.0
    %v1516 = vsel %vm157, %v1500, 0.0
    %v1517 = vsel %vm158, %v1501, 0.0
    %v1518 = vsel %vm159, %v1502, 0.0
    %v1519 = vsel %vm160, %v1503, 0.0
    %v1520 = vpack.c.bf16 %v1505, %v1504
    %v1521 = vpack.c.bf16 %v1507, %v1506
    %v1522 = vpack.c.bf16 %v1509, %v1508
    %v1523 = vpack.c.bf16 %v1511, %v1510
    %v1524 = vpack.c.bf16 %v1513, %v1512
    %v1525 = vpack.c.bf16 %v1515, %v1514
    %v1526 = vpack.c.bf16 %v1517, %v1516
    %v1527 = vpack.c.bf16 %v1519, %v1518
    %1528 = vst [vmem:[#allocation2 + $0x18] sm:$0xff] %v1520
    %1529 = vst [vmem:[#allocation2 + $0x38] sm:$0xff] %v1521
    %1530 = vst [vmem:[#allocation2 + $0x58] sm:$0xff] %v1522
    %1531 = vst [vmem:[#allocation2 + $0x78] sm:$0xff] %v1523
    %1532 = vst [vmem:[#allocation2 + $0x98] sm:$0xff] %v1524
    %1533 = vst [vmem:[#allocation2 + $0xb8] sm:$0xff] %v1525
    %1534 = vst [vmem:[#allocation2 + $0xd8] sm:$0xff] %v1526
    %1535 = vst [vmem:[#allocation2 + $0xf8] sm:$0xff] %v1527
    %v1536 = vld [vmem:[%s4] sm:$0xf]
    %v1537 = vld [vmem:[#allocation2] sm:$0xff]
    %v1538 = vld [vmem:[#allocation2 + $0x8] sm:$0xff]
    %v1539 = vld [vmem:[#allocation2 + $0x10] sm:$0xff]
    %v1540 = vld [vmem:[#allocation2 + $0x18] sm:$0xff]
    %v1541 = vld [vmem:[#allocation2 + $0x20] sm:$0xff]
    %v1542 = vld [vmem:[#allocation2 + $0x28] sm:$0xff]
    %v1543 = vld [vmem:[#allocation2 + $0x30] sm:$0xff]
    %v1544 = vld [vmem:[#allocation2 + $0x38] sm:$0xff]
    %v1545 = vld [vmem:[#allocation2 + $0x40] sm:$0xff]
    %v1546 = vld [vmem:[#allocation2 + $0x48] sm:$0xff]
    %v1547 = vld [vmem:[#allocation2 + $0x50] sm:$0xff]
    %v1548 = vld [vmem:[#allocation2 + $0x58] sm:$0xff]
    %v1549 = vld [vmem:[#allocation2 + $0x60] sm:$0xff]
    %v1550 = vld [vmem:[#allocation2 + $0x68] sm:$0xff]
    %v1551 = vld [vmem:[#allocation2 + $0x70] sm:$0xff]
    %v1552 = vld [vmem:[#allocation2 + $0x78] sm:$0xff]
    %v1553 = vld [vmem:[#allocation2 + $0x80] sm:$0xff]
    %v1554 = vld [vmem:[#allocation2 + $0x88] sm:$0xff]
    %v1555 = vld [vmem:[#allocation2 + $0x90] sm:$0xff]
    %v1556 = vld [vmem:[#allocation2 + $0x98] sm:$0xff]
    %v1557 = vld [vmem:[#allocation2 + $0xa0] sm:$0xff]
    %v1558 = vld [vmem:[#allocation2 + $0xa8] sm:$0xff]
    %v1559 = vld [vmem:[#allocation2 + $0xb0] sm:$0xff]
    %v1560 = vld [vmem:[#allocation2 + $0xb8] sm:$0xff]
    %v1561 = vld [vmem:[#allocation2 + $0xc0] sm:$0xff]
    %v1562 = vld [vmem:[#allocation2 + $0xc8] sm:$0xff]
    %v1563 = vld [vmem:[#allocation2 + $0xd0] sm:$0xff]
    %v1564 = vld [vmem:[#allocation2 + $0xd8] sm:$0xff]
    %v1565 = vld [vmem:[#allocation2 + $0xe0] sm:$0xff]
    %v1566 = vld [vmem:[#allocation2 + $0xe8] sm:$0xff]
    %v1567 = vld [vmem:[#allocation2 + $0xf0] sm:$0xff]
    %v1568 = vld [vmem:[#allocation2 + $0xf8] sm:$0xff]
    %1569 = vmatprep.subr.bf16.mxu0 %v1538
    %1570 = vmatpush1.bf16.msra.mxu0 %v1537
    %1571 = vmatprep.subr.bf16.mxu0 %v1542
    %1572 = vmatpush1.bf16.msra.mxu0 %v1541
    %1573 = vmatprep.subr.bf16.mxu0 %v1546
    %1574 = vmatpush1.bf16.msra.mxu0 %v1545
    %1575 = vmatprep.subr.bf16.mxu0 %v1550
    %1576 = vmatpush1.bf16.msra.mxu0 %v1549
    %1577 = vmatprep.subr.bf16.mxu0 %v1554
    %1578 = vmatpush1.bf16.msra.mxu0 %v1553
    %1579 = vmatprep.subr.bf16.mxu0 %v1558
    %1580 = vmatpush1.bf16.msra.mxu0 %v1557
    %1581 = vmatprep.subr.bf16.mxu0 %v1562
    %1582 = vmatpush1.bf16.msra.mxu0 %v1561
    %1583 = vmatprep.subr.bf16.mxu0 %v1566
    %1584 = vmatpush1.bf16.msra.mxu0 %v1565
    %1585 = vmatprep.subr.bf16.mxu0 0
    %1586 = vmatpush1.bf16.msra.mxu0 0
    %1587 = vmatprep.subr.bf16.mxu0 0
    %1588 = vmatpush1.bf16.msra.mxu0 0
    %1589 = vmatprep.subr.bf16.mxu0 0
    %1590 = vmatpush1.bf16.msra.mxu0 0
    %1591 = vmatprep.subr.bf16.mxu0 0
    %1592 = vmatpush1.bf16.msra.mxu0 0
    %1593 = vmatprep.subr.bf16.mxu0 0
    %1594 = vmatpush1.bf16.msra.mxu0 0
    %1595 = vmatprep.subr.bf16.mxu0 0
    %1596 = vmatpush1.bf16.msra.mxu0 0
    %1597 = vmatprep.subr.bf16.mxu0 0
    %1598 = vmatpush1.bf16.msra.mxu0 0
    %1599 = vmatprep.subr.bf16.mxu0 0
    %1600 = vmatpush1.bf16.msra.mxu0 0
    %1601 = vmatprep.mubr.bf16.mxu0 0
    %1602 = vmatmul.mubr.bf16.gmra.mrb[0].mxu0 %v1536
    %v1603 = vpop.f32.mrb[0].mxu0
    %v1604 = vadd.f32 0.0, %v1603
    %v1605 = vpop.f32.mrb[0].mxu0
    %v1606 = vadd.f32 0.0, %v1605
    %v1607 = vpop.f32.mrb[0].mxu0
    %v1608 = vpop.f32.mrb[0].mxu0
    %1609 = vdwg.mxu0
    %1610 = vmatprep.subr.bf16.mxu0 %v1540
    %1611 = vmatpush1.bf16.msra.mxu0 %v1539
    %1612 = vmatprep.subr.bf16.mxu0 %v1544
    %1613 = vmatpush1.bf16.msra.mxu0 %v1543
    %1614 = vmatprep.subr.bf16.mxu0 %v1548
    %1615 = vmatpush1.bf16.msra.mxu0 %v1547
    %1616 = vmatprep.subr.bf16.mxu0 %v1552
    %1617 = vmatpush1.bf16.msra.mxu0 %v1551
    %1618 = vmatprep.subr.bf16.mxu0 %v1556
    %1619 = vmatpush1.bf16.msra.mxu0 %v1555
    %1620 = vmatprep.subr.bf16.mxu0 %v1560
    %1621 = vmatpush1.bf16.msra.mxu0 %v1559
    %1622 = vmatprep.subr.bf16.mxu0 %v1564
    %1623 = vmatpush1.bf16.msra.mxu0 %v1563
    %1624 = vmatprep.subr.bf16.mxu0 %v1568
    %1625 = vmatpush1.bf16.msra.mxu0 %v1567
    %1626 = vmatprep.subr.bf16.mxu0 0
    %1627 = vmatpush1.bf16.msra.mxu0 0
    %1628 = vmatprep.subr.bf16.mxu0 0
    %1629 = vmatpush1.bf16.msra.mxu0 0
    %1630 = vmatprep.subr.bf16.mxu0 0
    %1631 = vmatpush1.bf16.msra.mxu0 0
    %1632 = vmatprep.subr.bf16.mxu0 0
    %1633 = vmatpush1.bf16.msra.mxu0 0
    %1634 = vmatprep.subr.bf16.mxu0 0
    %1635 = vmatpush1.bf16.msra.mxu0 0
    %1636 = vmatprep.subr.bf16.mxu0 0
    %1637 = vmatpush1.bf16.msra.mxu0 0
    %1638 = vmatprep.subr.bf16.mxu0 0
    %1639 = vmatpush1.bf16.msra.mxu0 0
    %1640 = vmatprep.subr.bf16.mxu0 0
    %1641 = vmatpush1.bf16.msra.mxu0 0
    %1642 = vmatprep.mubr.bf16.mxu0 0
    %1643 = vmatmul.mubr.bf16.gmra.mrb[0].mxu0 %v1536
    %v1644 = vpop.f32.mrb[0].mxu0
    %v1645 = vadd.f32 0.0, %v1644
    %v1646 = vpop.f32.mrb[0].mxu0
    %v1647 = vadd.f32 0.0, %v1646
    %v1648 = vpop.f32.mrb[0].mxu0
    %v1649 = vpop.f32.mrb[0].mxu0
    %1650 = vdwg.mxu0
    %v1651 = vld [vmem:[%s3 + $0x4] sm:$0x1]
    %v1652 = vpack.c.bf16 %v1604, %v1604
    %v1653 = vpack.c.bf16 %v1606, %v1606
    %v1654 = vpack.c.bf16 %v1645, %v1645
    %v1655 = vpack.c.bf16 %v1647, %v1647
    %v1656 = vld [vmem:[#allocation9] sm:$0xf]
    %v1657 = vld [vmem:[#allocation9 + $0x4] sm:$0xf]
    %v1658 = vld [vmem:[#allocation9 + $0x8] sm:$0xf]
    %v1659 = vld [vmem:[#allocation9 + $0xc] sm:$0xf]
    %v1660 = vld [vmem:[#allocation9 + $0x10] sm:$0xf]
    %v1661 = vld [vmem:[#allocation9 + $0x14] sm:$0xf]
    %v1662 = vld [vmem:[#allocation9 + $0x18] sm:$0xf]
    %v1663 = vld [vmem:[#allocation9 + $0x1c] sm:$0xf]
    %v1664 = vld [vmem:[#allocation9 + $0x20] sm:$0xf]
    %v1665 = vld [vmem:[#allocation9 + $0x24] sm:$0xf]
    %v1666 = vld [vmem:[#allocation9 + $0x28] sm:$0xf]
    %v1667 = vld [vmem:[#allocation9 + $0x2c] sm:$0xf]
    %v1668 = vld [vmem:[#allocation9 + $0x30] sm:$0xf]
    %v1669 = vld [vmem:[#allocation9 + $0x34] sm:$0xf]
    %v1670 = vld [vmem:[#allocation9 + $0x38] sm:$0xf]
    %v1671 = vld [vmem:[#allocation9 + $0x3c] sm:$0xf]
    %v1672 = vld [vmem:[#allocation9 + $0x40] sm:$0xf]
    %v1673 = vld [vmem:[#allocation9 + $0x44] sm:$0xf]
    %v1674 = vld [vmem:[#allocation9 + $0x48] sm:$0xf]
    %v1675 = vld [vmem:[#allocation9 + $0x4c] sm:$0xf]
    %v1676 = vld [vmem:[#allocation9 + $0x50] sm:$0xf]
    %v1677 = vld [vmem:[#allocation9 + $0x54] sm:$0xf]
    %v1678 = vld [vmem:[#allocation9 + $0x58] sm:$0xf]
    %v1679 = vld [vmem:[#allocation9 + $0x5c] sm:$0xf]
    %v1680 = vld [vmem:[#allocation9 + $0x60] sm:$0xf]
    %v1681 = vld [vmem:[#allocation9 + $0x64] sm:$0xf]
    %v1682 = vld [vmem:[#allocation9 + $0x68] sm:$0xf]
    %v1683 = vld [vmem:[#allocation9 + $0x6c] sm:$0xf]
    %v1684 = vld [vmem:[#allocation9 + $0x70] sm:$0xf]
    %v1685 = vld [vmem:[#allocation9 + $0x74] sm:$0xf]
    %v1686 = vld [vmem:[#allocation9 + $0x78] sm:$0xf]
    %v1687 = vld [vmem:[#allocation9 + $0x7c] sm:$0xf]
    %v1688 = vld [vmem:[#allocation9 + $0x80] sm:$0xf]
    %v1689 = vld [vmem:[#allocation9 + $0x84] sm:$0xf]
    %v1690 = vld [vmem:[#allocation9 + $0x88] sm:$0xf]
    %v1691 = vld [vmem:[#allocation9 + $0x8c] sm:$0xf]
    %v1692 = vld [vmem:[#allocation9 + $0x90] sm:$0xf]
    %v1693 = vld [vmem:[#allocation9 + $0x94] sm:$0xf]
    %v1694 = vld [vmem:[#allocation9 + $0x98] sm:$0xf]
    %v1695 = vld [vmem:[#allocation9 + $0x9c] sm:$0xf]
    %v1696 = vld [vmem:[#allocation9 + $0xa0] sm:$0xf]
    %v1697 = vld [vmem:[#allocation9 + $0xa4] sm:$0xf]
    %v1698 = vld [vmem:[#allocation9 + $0xa8] sm:$0xf]
    %v1699 = vld [vmem:[#allocation9 + $0xac] sm:$0xf]
    %v1700 = vld [vmem:[#allocation9 + $0xb0] sm:$0xf]
    %v1701 = vld [vmem:[#allocation9 + $0xb4] sm:$0xf]
    %v1702 = vld [vmem:[#allocation9 + $0xb8] sm:$0xf]
    %v1703 = vld [vmem:[#allocation9 + $0xbc] sm:$0xf]
    %v1704 = vld [vmem:[#allocation9 + $0xc0] sm:$0xf]
    %v1705 = vld [vmem:[#allocation9 + $0xc4] sm:$0xf]
    %v1706 = vld [vmem:[#allocation9 + $0xc8] sm:$0xf]
    %v1707 = vld [vmem:[#allocation9 + $0xcc] sm:$0xf]
    %v1708 = vld [vmem:[#allocation9 + $0xd0] sm:$0xf]
    %v1709 = vld [vmem:[#allocation9 + $0xd4] sm:$0xf]
    %v1710 = vld [vmem:[#allocation9 + $0xd8] sm:$0xf]
    %v1711 = vld [vmem:[#allocation9 + $0xdc] sm:$0xf]
    %v1712 = vld [vmem:[#allocation9 + $0xe0] sm:$0xf]
    %v1713 = vld [vmem:[#allocation9 + $0xe4] sm:$0xf]
    %v1714 = vld [vmem:[#allocation9 + $0xe8] sm:$0xf]
    %v1715 = vld [vmem:[#allocation9 + $0xec] sm:$0xf]
    %v1716 = vld [vmem:[#allocation9 + $0xf0] sm:$0xf]
    %v1717 = vld [vmem:[#allocation9 + $0xf4] sm:$0xf]
    %v1718 = vld [vmem:[#allocation9 + $0xf8] sm:$0xf]
    %v1719 = vld [vmem:[#allocation9 + $0xfc] sm:$0xf]
    %v1720 = vlaneseq
    %v1721 = vshrl.u32 %v1720, 7
    %v1722 = vsub.s32 0, %v1721
    %v1723 = vrot.slane %v1651, %v1722
    %v1788 = vunpack.c.l.b16 %v1656
    %v1789 = vunpack.c.l.b16 %v1657
    %v1790 = vunpack.c.l.b16 %v1658
    %v1791 = vunpack.c.l.b16 %v1659
    %v1792 = vunpack.c.l.b16 %v1660
    %v1793 = vunpack.c.l.b16 %v1661
    %v1794 = vunpack.c.l.b16 %v1662
    %v1795 = vunpack.c.l.b16 %v1663
    %v1796 = vunpack.c.l.b16 %v1664
    %v1797 = vunpack.c.l.b16 %v1665
    %v1798 = vunpack.c.l.b16 %v1666
    %v1799 = vunpack.c.l.b16 %v1667
    %v1800 = vunpack.c.l.b16 %v1668
    %v1801 = vunpack.c.l.b16 %v1669
    %v1802 = vunpack.c.l.b16 %v1670
    %v1803 = vunpack.c.l.b16 %v1671
    %v1804 = vunpack.c.l.b16 %v1672
    %v1805 = vunpack.c.l.b16 %v1673
    %v1806 = vunpack.c.l.b16 %v1674
    %v1807 = vunpack.c.l.b16 %v1675
    %v1808 = vunpack.c.l.b16 %v1676
    %v1809 = vunpack.c.l.b16 %v1677
    %v1810 = vunpack.c.l.b16 %v1678
    %v1811 = vunpack.c.l.b16 %v1679
    %v1812 = vunpack.c.l.b16 %v1680
    %v1813 = vunpack.c.l.b16 %v1681
    %v1814 = vunpack.c.l.b16 %v1682
    %v1815 = vunpack.c.l.b16 %v1683
    %v1816 = vunpack.c.l.b16 %v1684
    %v1817 = vunpack.c.l.b16 %v1685
    %v1818 = vunpack.c.l.b16 %v1686
    %v1819 = vunpack.c.l.b16 %v1687
    %v1820 = vunpack.c.l.b16 %v1688
    %v1821 = vunpack.c.l.b16 %v1689
    %v1822 = vunpack.c.l.b16 %v1690
    %v1823 = vunpack.c.l.b16 %v1691
    %v1824 = vunpack.c.l.b16 %v1692
    %v1825 = vunpack.c.l.b16 %v1693
    %v1826 = vunpack.c.l.b16 %v1694
    %v1827 = vunpack.c.l.b16 %v1695
    %v1828 = vunpack.c.l.b16 %v1696
    %v1829 = vunpack.c.l.b16 %v1697
    %v1830 = vunpack.c.l.b16 %v1698
    %v1831 = vunpack.c.l.b16 %v1699
    %v1832 = vunpack.c.l.b16 %v1700
    %v1833 = vunpack.c.l.b16 %v1701
    %v1834 = vunpack.c.l.b16 %v1702
    %v1835 = vunpack.c.l.b16 %v1703
    %v1836 = vunpack.c.l.b16 %v1704
    %v1837 = vunpack.c.l.b16 %v1705
    %v1838 = vunpack.c.l.b16 %v1706
    %v1839 = vunpack.c.l.b16 %v1707
    %v1840 = vunpack.c.l.b16 %v1708
    %v1841 = vunpack.c.l.b16 %v1709
    %v1842 = vunpack.c.l.b16 %v1710
    %v1843 = vunpack.c.l.b16 %v1711
    %v1844 = vunpack.c.l.b16 %v1712
    %v1845 = vunpack.c.l.b16 %v1713
    %v1846 = vunpack.c.l.b16 %v1714
    %v1847 = vunpack.c.l.b16 %v1715
    %v1848 = vunpack.c.l.b16 %v1716
    %v1849 = vunpack.c.l.b16 %v1717
    %v1850 = vunpack.c.l.b16 %v1718
    %v1851 = vunpack.c.l.b16 %v1719
    %v1852 = vpack.c.b16 %v1789, %v1788
    %v1853 = vpack.c.b16 %v1791, %v1790
    %v1854 = vpack.c.b16 %v1793, %v1792
    %v1855 = vpack.c.b16 %v1795, %v1794
    %v1856 = vpack.c.b16 %v1797, %v1796
    %v1857 = vpack.c.b16 %v1799, %v1798
    %v1858 = vpack.c.b16 %v1801, %v1800
    %v1859 = vpack.c.b16 %v1803, %v1802
    %v1860 = vpack.c.b16 %v1805, %v1804
    %v1861 = vpack.c.b16 %v1807, %v1806
    %v1862 = vpack.c.b16 %v1809, %v1808
    %v1863 = vpack.c.b16 %v1811, %v1810
    %v1864 = vpack.c.b16 %v1813, %v1812
    %v1865 = vpack.c.b16 %v1815, %v1814
    %v1866 = vpack.c.b16 %v1817, %v1816
    %v1867 = vpack.c.b16 %v1819, %v1818
    %v1868 = vpack.c.b16 %v1821, %v1820
    %v1869 = vpack.c.b16 %v1823, %v1822
    %v1870 = vpack.c.b16 %v1825, %v1824
    %v1871 = vpack.c.b16 %v1827, %v1826
    %v1872 = vpack.c.b16 %v1829, %v1828
    %v1873 = vpack.c.b16 %v1831, %v1830
    %v1874 = vpack.c.b16 %v1833, %v1832
    %v1875 = vpack.c.b16 %v1835, %v1834
    %v1876 = vpack.c.b16 %v1837, %v1836
    %v1877 = vpack.c.b16 %v1839, %v1838
    %v1878 = vpack.c.b16 %v1841, %v1840
    %v1879 = vpack.c.b16 %v1843, %v1842
    %v1880 = vpack.c.b16 %v1845, %v1844
    %v1881 = vpack.c.b16 %v1847, %v1846
    %v1882 = vpack.c.b16 %v1849, %v1848
    %v1883 = vpack.c.b16 %v1851, %v1850
    %1916 = vmatprep.subr.bf16.mxu0 0
    %1917 = vmatpush1.bf16.msra.mxu0 %v1852
    %1918 = vmatprep.subr.bf16.mxu0 0
    %1919 = vmatpush1.bf16.msra.mxu0 %v1853
    %1920 = vmatprep.subr.bf16.mxu0 0
    %1921 = vmatpush1.bf16.msra.mxu0 %v1854
    %1922 = vmatprep.subr.bf16.mxu0 0
    %1923 = vmatpush1.bf16.msra.mxu0 %v1855
    %1924 = vmatprep.subr.bf16.mxu0 0
    %1925 = vmatpush1.bf16.msra.mxu0 %v1856
    %1926 = vmatprep.subr.bf16.mxu0 0
    %1927 = vmatpush1.bf16.msra.mxu0 %v1857
    %1928 = vmatprep.subr.bf16.mxu0 0
    %1929 = vmatpush1.bf16.msra.mxu0 %v1858
    %1930 = vmatprep.subr.bf16.mxu0 0
    %1931 = vmatpush1.bf16.msra.mxu0 %v1859
    %1932 = vmatprep.subr.bf16.mxu0 0
    %1933 = vmatpush1.bf16.msra.mxu0 %v1860
    %1934 = vmatprep.subr.bf16.mxu0 0
    %1935 = vmatpush1.bf16.msra.mxu0 %v1861
    %1936 = vmatprep.subr.bf16.mxu0 0
    %1937 = vmatpush1.bf16.msra.mxu0 %v1862
    %1938 = vmatprep.subr.bf16.mxu0 0
    %1939 = vmatpush1.bf16.msra.mxu0 %v1863
    %1940 = vmatprep.subr.bf16.mxu0 0
    %1941 = vmatpush1.bf16.msra.mxu0 %v1864
    %1942 = vmatprep.subr.bf16.mxu0 0
    %1943 = vmatpush1.bf16.msra.mxu0 %v1865
    %1944 = vmatprep.subr.bf16.mxu0 0
    %1945 = vmatpush1.bf16.msra.mxu0 %v1866
    %1946 = vmatprep.subr.bf16.mxu0 0
    %1947 = vmatpush1.bf16.msra.mxu0 %v1867
    %1948 = vmatprep.mubr.bf16.mxu0 %v1653
    %1949 = vmatmul.mubr.bf16.gmra.mrb[0].mxu0 %v1652
    %v1950 = vpop.f32.mrb[0].mxu0
    %v1951 = vadd.f32 %v1723, %v1950
    %v1952 = vpop.f32.mrb[0].mxu0
    %v1953 = vpop.f32.mrb[0].mxu0
    %v1954 = vpop.f32.mrb[0].mxu0
    %1955 = vdwg.mxu0
    %1956 = vmatprep.subr.bf16.mxu0 0
    %1957 = vmatpush1.bf16.msra.mxu0 %v1868
    %1958 = vmatprep.subr.bf16.mxu0 0
    %1959 = vmatpush1.bf16.msra.mxu0 %v1869
    %1960 = vmatprep.subr.bf16.mxu0 0
    %1961 = vmatpush1.bf16.msra.mxu0 %v1870
    %1962 = vmatprep.subr.bf16.mxu0 0
    %1963 = vmatpush1.bf16.msra.mxu0 %v1871
    %1964 = vmatprep.subr.bf16.mxu0 0
    %1965 = vmatpush1.bf16.msra.mxu0 %v1872
    %1966 = vmatprep.subr.bf16.mxu0 0
    %1967 = vmatpush1.bf16.msra.mxu0 %v1873
    %1968 = vmatprep.subr.bf16.mxu0 0
    %1969 = vmatpush1.bf16.msra.mxu0 %v1874
    %1970 = vmatprep.subr.bf16.mxu0 0
    %1971 = vmatpush1.bf16.msra.mxu0 %v1875
    %1972 = vmatprep.subr.bf16.mxu0 0
    %1973 = vmatpush1.bf16.msra.mxu0 %v1876
    %1974 = vmatprep.subr.bf16.mxu0 0
    %1975 = vmatpush1.bf16.msra.mxu0 %v1877
    %1976 = vmatprep.subr.bf16.mxu0 0
    %1977 = vmatpush1.bf16.msra.mxu0 %v1878
    %1978 = vmatprep.subr.bf16.mxu0 0
    %1979 = vmatpush1.bf16.msra.mxu0 %v1879
    %1980 = vmatprep.subr.bf16.mxu0 0
    %1981 = vmatpush1.bf16.msra.mxu0 %v1880
    %1982 = vmatprep.subr.bf16.mxu0 0
    %1983 = vmatpush1.bf16.msra.mxu0 %v1881
    %1984 = vmatprep.subr.bf16.mxu0 0
    %1985 = vmatpush1.bf16.msra.mxu0 %v1882
    %1986 = vmatprep.subr.bf16.mxu0 0
    %1987 = vmatpush1.bf16.msra.mxu0 %v1883
    %1988 = vmatprep.mubr.bf16.mxu0 %v1655
    %1989 = vmatmul.mubr.bf16.gmra.mrb[0].mxu0 %v1654
    %v1990 = vpop.f32.mrb[0].mxu0
    %v1991 = vadd.f32 %v1951, %v1990
    %v1992 = vpop.f32.mrb[0].mxu0
    %v1993 = vpop.f32.mrb[0].mxu0
    %v1994 = vpop.f32.mrb[0].mxu0
    %1995 = vdwg.mxu0
    %v1996 = vmax.f32 %v1991, 0.0
    %v1997 = vld [vmem:[%s3 + $0x5] sm:$0x1]
    %v1998 = vpack.c.bf16 %v1996, %v1996
    %v1999 = vld [vmem:[#allocation11] sm:$0xf]
    %v2000 = vld [vmem:[#allocation11 + $0x4] sm:$0xf]
    %v2001 = vld [vmem:[#allocation11 + $0x8] sm:$0xf]
    %v2002 = vld [vmem:[#allocation11 + $0xc] sm:$0xf]
    %v2003 = vld [vmem:[#allocation11 + $0x10] sm:$0xf]
    %v2004 = vld [vmem:[#allocation11 + $0x14] sm:$0xf]
    %v2005 = vld [vmem:[#allocation11 + $0x18] sm:$0xf]
    %v2006 = vld [vmem:[#allocation11 + $0x1c] sm:$0xf]
    %v2007 = vld [vmem:[#allocation11 + $0x20] sm:$0xf]
    %v2008 = vld [vmem:[#allocation11 + $0x24] sm:$0xf]
    %v2009 = vld [vmem:[#allocation11 + $0x28] sm:$0xf]
    %v2010 = vld [vmem:[#allocation11 + $0x2c] sm:$0xf]
    %v2011 = vld [vmem:[#allocation11 + $0x30] sm:$0xf]
    %v2012 = vld [vmem:[#allocation11 + $0x34] sm:$0xf]
    %v2013 = vld [vmem:[#allocation11 + $0x38] sm:$0xf]
    %v2014 = vld [vmem:[#allocation11 + $0x3c] sm:$0xf]
    %v2015 = vlaneseq
    %v2016 = vshrl.u32 %v2015, 7
    %v2017 = vsub.s32 0, %v2016
    %v2018 = vrot.slane %v1997, %v2017
    %v2035 = vunpack.c.l.b16 %v1999
    %v2036 = vunpack.c.l.b16 %v2000
    %v2037 = vunpack.c.l.b16 %v2001
    %v2038 = vunpack.c.l.b16 %v2002
    %v2039 = vunpack.c.l.b16 %v2003
    %v2040 = vunpack.c.l.b16 %v2004
    %v2041 = vunpack.c.l.b16 %v2005
    %v2042 = vunpack.c.l.b16 %v2006
    %v2043 = vunpack.c.l.b16 %v2007
    %v2044 = vunpack.c.l.b16 %v2008
    %v2045 = vunpack.c.l.b16 %v2009
    %v2046 = vunpack.c.l.b16 %v2010
    %v2047 = vunpack.c.l.b16 %v2011
    %v2048 = vunpack.c.l.b16 %v2012
    %v2049 = vunpack.c.l.b16 %v2013
    %v2050 = vunpack.c.l.b16 %v2014
    %v2051 = vpack.c.b16 %v2036, %v2035
    %v2052 = vpack.c.b16 %v2038, %v2037
    %v2053 = vpack.c.b16 %v2040, %v2039
    %v2054 = vpack.c.b16 %v2042, %v2041
    %v2055 = vpack.c.b16 %v2044, %v2043
    %v2056 = vpack.c.b16 %v2046, %v2045
    %v2057 = vpack.c.b16 %v2048, %v2047
    %v2058 = vpack.c.b16 %v2050, %v2049
    %2067 = vmatprep.subr.bf16.mxu0 0
    %2068 = vmatpush1.bf16.msra.mxu0 %v2051
    %2069 = vmatprep.subr.bf16.mxu0 0
    %2070 = vmatpush1.bf16.msra.mxu0 %v2052
    %2071 = vmatprep.subr.bf16.mxu0 0
    %2072 = vmatpush1.bf16.msra.mxu0 %v2053
    %2073 = vmatprep.subr.bf16.mxu0 0
    %2074 = vmatpush1.bf16.msra.mxu0 %v2054
    %2075 = vmatprep.subr.bf16.mxu0 0
    %2076 = vmatpush1.bf16.msra.mxu0 %v2055
    %2077 = vmatprep.subr.bf16.mxu0 0
    %2078 = vmatpush1.bf16.msra.mxu0 %v2056
    %2079 = vmatprep.subr.bf16.mxu0 0
    %2080 = vmatpush1.bf16.msra.mxu0 %v2057
    %2081 = vmatprep.subr.bf16.mxu0 0
    %2082 = vmatpush1.bf16.msra.mxu0 %v2058
    %2083 = vmatprep.subr.bf16.mxu0 0
    %2084 = vmatpush1.bf16.msra.mxu0 0
    %2085 = vmatprep.subr.bf16.mxu0 0
    %2086 = vmatpush1.bf16.msra.mxu0 0
    %2087 = vmatprep.subr.bf16.mxu0 0
    %2088 = vmatpush1.bf16.msra.mxu0 0
    %2089 = vmatprep.subr.bf16.mxu0 0
    %2090 = vmatpush1.bf16.msra.mxu0 0
    %2091 = vmatprep.subr.bf16.mxu0 0
    %2092 = vmatpush1.bf16.msra.mxu0 0
    %2093 = vmatprep.subr.bf16.mxu0 0
    %2094 = vmatpush1.bf16.msra.mxu0 0
    %2095 = vmatprep.subr.bf16.mxu0 0
    %2096 = vmatpush1.bf16.msra.mxu0 0
    %2097 = vmatprep.subr.bf16.mxu0 0
    %2098 = vmatpush1.bf16.msra.mxu0 0
    %2099 = vmatprep.mubr.bf16.mxu0 0
    %2100 = vmatmul.mubr.bf16.gmra.mrb[0].mxu0 %v1998
    %v2101 = vpop.f32.mrb[0].mxu0
    %v2102 = vadd.f32 %v2018, %v2101
    %v2103 = vpop.f32.mrb[0].mxu0
    %v2104 = vpop.f32.mrb[0].mxu0
    %v2105 = vpop.f32.mrb[0].mxu0
    %2106 = vdwg.mxu0
    %2107 = vmax.xlane.f32.xlu0 %v2102
    %v2108 = vpop.xlane.xlu0 %2107
    %v2109 = vsub.f32 %v2102, %v2108
    %v2110 = vmul.f32 %v2109, 1.442695
    %v2111 = vpow.pop %v2110
    %2112 = vadd.xlane.f32.xlu0 %v2111
    %v2113 = vpop.xlane.xlu0 %2112
    %v2114 = vlog2.pop %v2113
    %v2115 = vmul.f32 %v2114, 0.6931472
    %v2116 = vsub.f32 %v2109, %v2115
    %2117 = vst [vmem:[#allocation12] sm:$0xff] %v2116
    // Predicated region
    $region50: #{tpu_custom_call.1} parent=1 // pred_check
      _
    $region51: #{tpu_custom_call.1} parent=1 // pred_check_branch
      %2119 = sbr.rel (0) target = $region53
    $region52: #{tpu_custom_call.1} parent=1 // pred_region
      %s2121 = ssub.s32 128, 128
      %2122 = vsyncadd [#allocation5], %s2121
      %s2124 = sshll.u32 [#allocation12], 4
      %s2125 = int_to_ptr.vmem [resolvable:$true] %s2124
      %2127 = dma.vmem_to_hbm [thread:$0]  %s2125, 128, %s7, [#allocation5]
    $region53: #{tpu_custom_call.1} parent=1 // pred_fallthru
      _
    // Predicated region
    $region54: #{tpu_custom_call.1} parent=1 // pred_check
      _
    $region55: #{tpu_custom_call.1} parent=1 // pred_check_branch
      %2129 = sbr.rel (0) target = $region57
    $region56: #{tpu_custom_call.1} parent=1 // pred_region
      %2130 = dma.done [#allocation5], 128
    $region57: #{tpu_custom_call.1} parent=1 // pred_fallthru
      _
    %2131 = vsyncpa [#allocation4], 1
    %2132 = vsyncpa [#allocation7], 1
    %2133 = vsyncpa [#allocation10], 1
    %2134 = vsyncpa [#allocation5], 1

</llo_original>
